<compile_context>
chip_gen: v6e
topology: v6e:2x2x1
jax: 0.10.0
libtpu: 0.0.40
codegen_flags: <defaults>
</compile_context>

<pallas_src>
import functools

import jax
import jax.numpy as jnp
from jax.experimental import pallas as pl
from jax.experimental.pallas import tpu as pltpu

BERT_DIM = 768
EMB_DIM = 32
NUM_CAT = 3
NUM_HIER = 6
NUM_CLASSES = 345
H1, H2 = 512, 256
BN_EPS = 1e-5
EMB_VOCAB = 10000
BERT_VOCAB = 1000  # synthetic stand-in vocab for the (not replicated) DistilBERT
TOTAL_IN = BERT_DIM + EMB_DIM * (NUM_CAT + NUM_HIER) + 1  # 1057


def _round_up(x, m):
    return (x + m - 1) // m * m


K_PAD = _round_up(TOTAL_IN, 128)        # 1152 = 9 * 128
OUT_PAD = _round_up(NUM_CLASSES, 128)   # 384  = 3 * 128
MAX_TILE_B = 1024                       # big tiles amortize grid overhead; ~12 MiB VMEM
VMEM_LIMIT_BYTES = 48 << 20             # explicit scoped-VMEM budget (fits v7x's 64 MiB)


# ----------------------------- Pallas kernel -------------------------------
def head_kernel(x_ref, w1_ref, b1_ref, w2_ref, b2_ref, w3_ref, b3_ref, out_ref):
    # x: bf16 [TB, K_PAD]; weights bf16; biases (BN pre-folded) f32.
    x = x_ref[...]

    # fc1 (+ folded BN1) -> ReLU; accumulate in f32, epilogue math in f32.
    h = jnp.dot(x, w1_ref[...], preferred_element_type=jnp.float32) + b1_ref[...]
    h = jnp.maximum(h, 0.0).astype(jnp.bfloat16)                       # [TB, 512]

    # fc2 (+ folded BN2) -> ReLU
    h = jnp.dot(h, w2_ref[...], preferred_element_type=jnp.float32) + b2_ref[...]
    h = jnp.maximum(h, 0.0).astype(jnp.bfloat16)                       # [TB, 256]

    # fc3 (logits, lane-dense padded to 384); bf16 writeback halves output HBM bytes
    logits = jnp.dot(h, w3_ref[...], preferred_element_type=jnp.float32) + b3_ref[...]
    out_ref[...] = logits.astype(out_ref.dtype)


# ------------------- param prep (fold BN, pad, cast) -- run ONCE ------------
def prepare_head_params(p):
    s1 = p['g1'] * jax.lax.rsqrt(p['v1'] + BN_EPS)                 # [1, H1]
    w1 = p['w1'] * s1
    b1 = (p['b1'] - p['m1']) * s1 + p['be1']
    s2 = p['g2'] * jax.lax.rsqrt(p['v2'] + BN_EPS)                 # [1, H2]
    w2 = p['w2'] * s2
    b2 = (p['b2'] - p['m2']) * s2 + p['be2']
    # zero-pad K rows of w1 and output columns of w3/b3 (numerically neutral)
    w1 = jnp.pad(w1, ((0, K_PAD - TOTAL_IN), (0, 0)))
    w3 = jnp.pad(p['w3'], ((0, 0), (0, OUT_PAD - NUM_CLASSES)))
    b3 = jnp.pad(p['b3'], ((0, 0), (0, OUT_PAD - NUM_CLASSES)))
    return {
        'w1': w1.astype(jnp.bfloat16), 'b1': b1.astype(jnp.float32),
        'w2': w2.astype(jnp.bfloat16), 'b2': b2.astype(jnp.float32),
        'w3': w3.astype(jnp.bfloat16), 'b3': b3.astype(jnp.float32),
    }


# ----------------------------- batch tiling ---------------------------------
def _pick_tile(B):
    # Balanced tiles: padding waste < 16 rows per tile; >= 2 grid steps for
    # moderate/large batches so v7x's two TensorCores both get work.
    n_tiles = pl.cdiv(B, MAX_TILE_B)
    if B >= 512:
        n_tiles = max(n_tiles, 2)
    tile_b = _round_up(pl.cdiv(B, n_tiles), 16)   # 16: bf16 packs 2 rows/sublane
    b_pad = _round_up(B, tile_b)
    return tile_b, b_pad


def head_forward(x, hp):
    """x: bf16 [B, K_PAD] (already bf16 and K-padded by the producer)."""
    B = x.shape[0]
    tile_b, b_pad = _pick_tile(B)
    if b_pad != B:
        x = jnp.pad(x, ((0, b_pad - B), (0, 0)))   # row pad only; fused by XLA

    const = lambda i: (0, 0)
    flops = 2 * b_pad * (K_PAD * H1 + H1 * H2 + H2 * OUT_PAD)
    bytes_accessed = (b_pad * K_PAD * 2
                      + (hp['w1'].size + hp['w2'].size + hp['w3'].size) * 2
                      + (H1 + H2 + OUT_PAD) * 4
                      + b_pad * OUT_PAD * 2)

    out = pl.pallas_call(
        head_kernel,
        out_shape=jax.ShapeDtypeStruct((b_pad, OUT_PAD), jnp.bfloat16),
        grid=(b_pad // tile_b,),
        in_specs=[
            pl.BlockSpec((tile_b, K_PAD), lambda i: (i, 0)),   # activation tile
            pl.BlockSpec((K_PAD, H1), const),                  # weights VMEM-resident
            pl.BlockSpec((1, H1), const),
            pl.BlockSpec((H1, H2), const),
            pl.BlockSpec((1, H2), const),
            pl.BlockSpec((H2, OUT_PAD), const),
            pl.BlockSpec((1, OUT_PAD), const),
        ],
        out_specs=pl.BlockSpec((tile_b, OUT_PAD), lambda i: (i, 0)),
        compiler_params=pltpu.CompilerParams(
            dimension_semantics=("parallel",),
            vmem_limit_bytes=VMEM_LIMIT_BYTES),
        cost_estimate=pl.CostEstimate(flops=flops, transcendentals=0,
                                      bytes_accessed=bytes_accessed),
    )(x, hp['w1'], hp['b1'], hp['w2'], hp['b2'], hp['w3'], hp['b3'])
    return out[:B, :NUM_CLASSES].astype(jnp.float32)


# ------------------------------- glue (JAX) --------------------------------
def init_params(key):
    ks = jax.random.split(key, 32)
    i = iter(range(32))
    n = lambda k, shape, s=0.02: jax.random.normal(ks[k], shape, jnp.float32) * s
    p = {}
    # synthetic BERT token-embedding table (stand-in backbone)
    p['bert_word_emb'] = n(next(i), (BERT_VOCAB, BERT_DIM))
    # categorical / hierarchical embedding tables: nn.Embedding(10000, 32)
    p['cat_emb'] = [n(next(i), (EMB_VOCAB, EMB_DIM)) for _ in range(NUM_CAT)]
    p['hier_emb'] = [n(next(i), (EMB_VOCAB, EMB_DIM)) for _ in range(NUM_HIER)]
    # fc1 / bn1
    p['w1'] = n(next(i), (TOTAL_IN, H1))
    p['b1'] = n(next(i), (1, H1))
    p['g1'] = 1.0 + n(next(i), (1, H1))
    p['be1'] = n(next(i), (1, H1))
    p['m1'] = n(next(i), (1, H1))
    p['v1'] = 1.0 + jnp.abs(n(next(i), (1, H1)))
    # fc2 / bn2
    p['w2'] = n(next(i), (H1, H2))
    p['b2'] = n(next(i), (1, H2))
    p['g2'] = 1.0 + n(next(i), (1, H2))
    p['be2'] = n(next(i), (1, H2))
    p['m2'] = n(next(i), (1, H2))
    p['v2'] = 1.0 + jnp.abs(n(next(i), (1, H2)))
    # fc3
    p['w3'] = n(next(i), (H2, NUM_CLASSES))
    p['b3'] = n(next(i), (1, NUM_CLASSES))
    return p


def model_forward(params, hp, input_ids, attention_mask, cat_features,
                  hier_features, amount):
    # TODO(synk): the pretrained DistilBERT transformer backbone is not replicated;
    # a deterministic token-embedding stand-in provides last_hidden_state[:, 0, :].
    tok = params['bert_word_emb'][input_ids]                          # [B, S, 768]
    tok = tok * attention_mask[..., None].astype(tok.dtype)
    bert_cls = tok[:, 0, :]                                           # [B, 768]
    B = bert_cls.shape[0]

    cat_embs = [params['cat_emb'][i][cat_features[:, i]] for i in range(NUM_CAT)]
    hier_embs = [params['hier_emb'][i][hier_features[:, i]] for i in range(NUM_HIER)]

    # Build `combined` directly in bf16 and already K-padded (zeros block appended)
    # so the kernel reads the producer's output with no extra pad/cast HBM pass.
    pieces = ([bert_cls] + cat_embs + hier_embs + [amount.astype(jnp.float32)]
              + [jnp.zeros((B, K_PAD - TOTAL_IN), jnp.float32)])
    x = jnp.concatenate([pc.astype(jnp.bfloat16) for pc in pieces], axis=1)  # [B, K_PAD]
    assert x.shape[1] == K_PAD

    return head_forward(x, hp)


if __name__ == "__main__":
    B, S = 2, 8
    key = jax.random.PRNGKey(0)
    k_ids, k_cat, k_hier, k_amt, k_param = jax.random.split(key, 5)

    input_ids = jax.random.randint(k_ids, (B, S), 0, BERT_VOCAB, dtype=jnp.int32)
    attention_mask = jnp.ones((B, S), dtype=jnp.int32)
    cat_features = jax.random.randint(k_cat, (B, NUM_CAT), 0, EMB_VOCAB, dtype=jnp.int32)
    hier_features = jax.random.randint(k_hier, (B, NUM_HIER), 0, EMB_VOCAB, dtype=jnp.int32)
    amount = jax.random.normal(k_amt, (B, 1), dtype=jnp.float32)

    params = init_params(k_param)
    hp = prepare_head_params(params)   # BN fold / pad / bf16 cast: done ONCE

    fwd = jax.jit(functools.partial(model_forward, params, hp))
    logits = fwd(input_ids, attention_mask, cat_features, hier_features, amount)
    logits = jax.block_until_ready(logits)
    assert logits.shape == (B, NUM_CLASSES), logits.shape
    assert logits.dtype == jnp.float32
    print("KERNEL_OK")
</pallas_src>

<mosaic_0001>
module attributes {stable_mosaic.version = 11 : i64} {
  func.func @head_kernel(%arg0: i32, %arg1: memref<16x1152xbf16, #tpu.memory_space<vmem>>, %arg2: memref<1152x512xbf16, #tpu.memory_space<vmem>>, %arg3: memref<1x512xf32, #tpu.memory_space<vmem>>, %arg4: memref<512x256xbf16, #tpu.memory_space<vmem>>, %arg5: memref<1x256xf32, #tpu.memory_space<vmem>>, %arg6: memref<256x384xbf16, #tpu.memory_space<vmem>>, %arg7: memref<1x384xf32, #tpu.memory_space<vmem>>, %arg8: memref<16x384xbf16, #tpu.memory_space<vmem>>) attributes {dimension_semantics = [#tpu.dimension_semantics<parallel>], iteration_bounds = array<i64: 1>, scalar_prefetch = 0 : i64, scratch_operands = 0 : i64, tpu.core_type = #tpu.core_type<tc>, window_params = [{transform_indices = @transform_0, window_bounds = array<i64: 16, 1152>}, {pipeline_mode = #tpu.pipeline_mode<synchronous>, transform_indices = @transform_1, window_bounds = array<i64: 1152, 512>}, {pipeline_mode = #tpu.pipeline_mode<synchronous>, transform_indices = @transform_2, window_bounds = array<i64: 1, 512>}, {pipeline_mode = #tpu.pipeline_mode<synchronous>, transform_indices = @transform_3, window_bounds = array<i64: 512, 256>}, {pipeline_mode = #tpu.pipeline_mode<synchronous>, transform_indices = @transform_4, window_bounds = array<i64: 1, 256>}, {pipeline_mode = #tpu.pipeline_mode<synchronous>, transform_indices = @transform_5, window_bounds = array<i64: 256, 384>}, {pipeline_mode = #tpu.pipeline_mode<synchronous>, transform_indices = @transform_6, window_bounds = array<i64: 1, 384>}, {transform_indices = @transform_7, window_bounds = array<i64: 16, 384>}]} {
    %c0 = arith.constant 0 : index
    %c0_0 = arith.constant 0 : index
    %0 = vector.load %arg1[%c0, %c0_0] : memref<16x1152xbf16, #tpu.memory_space<vmem>>, vector<16x1152xbf16>
    %c0_1 = arith.constant 0 : index
    %c0_2 = arith.constant 0 : index
    %1 = vector.load %arg2[%c0_1, %c0_2] : memref<1152x512xbf16, #tpu.memory_space<vmem>>, vector<1152x512xbf16>
    %cst = arith.constant dense<0.000000e+00> : vector<16x512xf32>
    %2 = tpu.matmul %0, %1, %cst {dimension_numbers = #tpu.dot_dimension_numbers<[1], [0], [0], [1], [0, 0, 1, 1], [], []>} : vector<16x1152xbf16>, vector<1152x512xbf16>, vector<16x512xf32> -> vector<16x512xf32>
    %c0_3 = arith.constant 0 : index
    %c0_4 = arith.constant 0 : index
    %3 = vector.load %arg3[%c0_3, %c0_4] : memref<1x512xf32, #tpu.memory_space<vmem>>, vector<1x512xf32>
    %4 = vector.broadcast %3 : vector<1x512xf32> to vector<16x512xf32>
    %5 = arith.addf %2, %4 : vector<16x512xf32>
    %cst_5 = arith.constant 0.000000e+00 : f32
    %6 = vector.broadcast %cst_5 : f32 to vector<16x512xf32>
    %7 = arith.maximumf %5, %6 : vector<16x512xf32>
    %8 = arith.truncf %7 : vector<16x512xf32> to vector<16x512xbf16>
    %c0_6 = arith.constant 0 : index
    %c0_7 = arith.constant 0 : index
    %9 = vector.load %arg4[%c0_6, %c0_7] : memref<512x256xbf16, #tpu.memory_space<vmem>>, vector<512x256xbf16>
    %cst_8 = arith.constant dense<0.000000e+00> : vector<16x256xf32>
    %10 = tpu.matmul %8, %9, %cst_8 {dimension_numbers = #tpu.dot_dimension_numbers<[1], [0], [0], [1], [0, 0, 1, 1], [], []>} : vector<16x512xbf16>, vector<512x256xbf16>, vector<16x256xf32> -> vector<16x256xf32>
    %c0_9 = arith.constant 0 : index
    %c0_10 = arith.constant 0 : index
    %11 = vector.load %arg5[%c0_9, %c0_10] : memref<1x256xf32, #tpu.memory_space<vmem>>, vector<1x256xf32>
    %12 = vector.broadcast %11 : vector<1x256xf32> to vector<16x256xf32>
    %13 = arith.addf %10, %12 : vector<16x256xf32>
    %cst_11 = arith.constant 0.000000e+00 : f32
    %14 = vector.broadcast %cst_11 : f32 to vector<16x256xf32>
    %15 = arith.maximumf %13, %14 : vector<16x256xf32>
    %16 = arith.truncf %15 : vector<16x256xf32> to vector<16x256xbf16>
    %c0_12 = arith.constant 0 : index
    %c0_13 = arith.constant 0 : index
    %17 = vector.load %arg6[%c0_12, %c0_13] : memref<256x384xbf16, #tpu.memory_space<vmem>>, vector<256x384xbf16>
    %cst_14 = arith.constant dense<0.000000e+00> : vector<16x384xf32>
    %18 = tpu.matmul %16, %17, %cst_14 {dimension_numbers = #tpu.dot_dimension_numbers<[1], [0], [0], [1], [0, 0, 1, 1], [], []>} : vector<16x256xbf16>, vector<256x384xbf16>, vector<16x384xf32> -> vector<16x384xf32>
    %c0_15 = arith.constant 0 : index
    %c0_16 = arith.constant 0 : index
    %19 = vector.load %arg7[%c0_15, %c0_16] : memref<1x384xf32, #tpu.memory_space<vmem>>, vector<1x384xf32>
    %20 = vector.broadcast %19 : vector<1x384xf32> to vector<16x384xf32>
    %21 = arith.addf %18, %20 : vector<16x384xf32>
    %22 = arith.truncf %21 : vector<16x384xf32> to vector<16x384xbf16>
    %c0_17 = arith.constant 0 : index
    %c0_18 = arith.constant 0 : index
    %23 = vector.load %arg8[%c0_17, %c0_18] : memref<16x384xbf16, #tpu.memory_space<vmem>>, vector<16x384xbf16>
    tpu.vector_store %arg8[%c0_17, %c0_18], %22 {strides = array<i32>} : memref<16x384xbf16, #tpu.memory_space<vmem>>, vector<16x384xbf16>,
    return
  }
  func.func @transform_0(%arg0: i32) -> (i32, i32) {
    %c0_i32 = arith.constant 0 : i32
    %c0_i32_0 = arith.constant 0 : i32
    return %arg0, %c0_i32 : i32, i32
  }
  func.func @transform_1(%arg0: i32) -> (i32, i32) {
    %c0_i32 = arith.constant 0 : i32
    %c0_i32_0 = arith.constant 0 : i32
    %c0_i32_1 = arith.constant 0 : i32
    return %c0_i32, %c0_i32_0 : i32, i32
  }
  func.func @transform_2(%arg0: i32) -> (i32, i32) {
    %c0_i32 = arith.constant 0 : i32
    %c0_i32_0 = arith.constant 0 : i32
    %c0_i32_1 = arith.constant 0 : i32
    return %c0_i32, %c0_i32_0 : i32, i32
  }
  func.func @transform_3(%arg0: i32) -> (i32, i32) {
    %c0_i32 = arith.constant 0 : i32
    %c0_i32_0 = arith.constant 0 : i32
    %c0_i32_1 = arith.constant 0 : i32
    return %c0_i32, %c0_i32_0 : i32, i32
  }
  func.func @transform_4(%arg0: i32) -> (i32, i32) {
    %c0_i32 = arith.constant 0 : i32
    %c0_i32_0 = arith.constant 0 : i32
    %c0_i32_1 = arith.constant 0 : i32
    return %c0_i32, %c0_i32_0 : i32, i32
  }
  func.func @transform_5(%arg0: i32) -> (i32, i32) {
    %c0_i32 = arith.constant 0 : i32
    %c0_i32_0 = arith.constant 0 : i32
    %c0_i32_1 = arith.constant 0 : i32
    return %c0_i32, %c0_i32_0 : i32, i32
  }
  func.func @transform_6(%arg0: i32) -> (i32, i32) {
    %c0_i32 = arith.constant 0 : i32
    %c0_i32_0 = arith.constant 0 : i32
    %c0_i32_1 = arith.constant 0 : i32
    return %c0_i32, %c0_i32_0 : i32, i32
  }
  func.func @transform_7(%arg0: i32) -> (i32, i32) {
    %c0_i32 = arith.constant 0 : i32
    %c0_i32_0 = arith.constant 0 : i32
    return %arg0, %c0_i32 : i32, i32
  }
}

</mosaic_0001>

<llo_original>
// kernel: model_forward.1
$region0: #{model_forward.1}
  #allocation0 [shape = 'u32[]', space=smem, size = 0x4, offset = 0x4, fixed_abs, tag = 'smem constant byte address 0x4 - core index']
  #allocation1 [shape = 'u32[144,128]{1,0:T(1,128)}', space=vmem, size = 0x12000, scoped, tag = 'internal scratch']
  %s0 = inlined_call_operand.vmem [shape: bf16[16,1152], index: 0, kind: input, shape index: {}]
  %s1 = inlined_call_operand.hbm [shape: bf16[1152,512], index: 1, kind: input, shape index: {}]
  %s2 = inlined_call_operand.hbm [shape: f32[1,512], index: 2, kind: input, shape index: {}]
  %s3 = inlined_call_operand.hbm [shape: bf16[512,256], index: 3, kind: input, shape index: {}]
  %s4 = inlined_call_operand.hbm [shape: f32[1,256], index: 4, kind: input, shape index: {}]
  %s5 = inlined_call_operand.hbm [shape: bf16[256,384], index: 5, kind: input, shape index: {}]
  %s6 = inlined_call_operand.hbm [shape: f32[1,384], index: 6, kind: input, shape index: {}]
  %s7 = inlined_call_operand.vmem [shape: bf16[16,384], index: 7, kind: output, shape index: {}]
  %s8 = sld [smem:[#allocation0]]
  $region62: #{model_forward.1} parent=0
    _
  %s10 = ssub.s32 1, %s8
  %s11 = scalar_select 0, %s10, %s8
  $region1: #{model_forward.1} parent=0
    #allocation2 [shape = 'u8[1179648]{0}', space=vmem, size = 0x120000, scoped, tag = 'input window, operand 1, single buffered']
    #allocation3 [shape = 's32[1]{0}', space=sflag, size = 0x4, scoped, tag = 'scoped memory for model_forward.1']
    #allocation4 [shape = 'u8[2048]{0}', space=vmem, size = 0x800, scoped, tag = 'input window, operand 2, single buffered']
    #allocation5 [shape = 's32[1]{0}', space=sflag, size = 0x4, scoped, tag = 'scoped memory for model_forward.1']
    #allocation6 [shape = 'u8[262144]{0}', space=vmem, size = 0x40000, scoped, tag = 'input window, operand 3, single buffered']
    #allocation7 [shape = 'u8[1024]{0}', space=vmem, size = 0x400, scoped, tag = 'input window, operand 4, single buffered']
    #allocation8 [shape = 's32[1]{0}', space=sflag, size = 0x4, scoped, tag = 'scoped memory for model_forward.1']
    #allocation9 [shape = 'u8[196608]{0}', space=vmem, size = 0x30000, scoped, tag = 'input window, operand 5, single buffered']
    #allocation10 [shape = 'u8[1536]{0}', space=vmem, size = 0x800, scoped, tag = 'input window, operand 6, single buffered']
    #allocation11 [shape = 's32[1]{0}', space=sflag, size = 0x4, scoped, tag = 'scoped memory for model_forward.1']
    %12 = vsyncpa [#allocation3], 0
    %13 = vsyncpa [#allocation5], 0
    %14 = vsyncpa [#allocation8], 0
    %15 = vsyncpa [#allocation11], 0
    // Predicated region
    $region2: #{model_forward.1} parent=1 // pred_check
      _
    $region3: #{model_forward.1} parent=1 // pred_check_branch
      %17 = sbr.rel (0) target = $region5
    $region4: #{model_forward.1} parent=1 // pred_region
      _
    $region5: #{model_forward.1} parent=1 // pred_fallthru
      _
    // Predicated region
    $region6: #{model_forward.1} parent=1 // pred_check
      _
    $region7: #{model_forward.1} parent=1 // pred_check_branch
      %19 = sbr.rel (0) target = $region9
    $region8: #{model_forward.1} parent=1 // pred_region
      %s21 = ssub.s32 36864, 36864
      %22 = vsyncadd [#allocation3], %s21
      %s23 = sshll.u32 [#allocation2], 4
      %s24 = int_to_ptr.vmem [resolvable:$true] %s23
      %29 = dma.hbm_to_vmem [thread:$0]  %s1, 36864, %s24, [#allocation3], 256, 256, 16
    $region9: #{model_forward.1} parent=1 // pred_fallthru
      _
    // Predicated region
    $region10: #{model_forward.1} parent=1 // pred_check
      _
    $region11: #{model_forward.1} parent=1 // pred_check_branch
      %31 = sbr.rel (0) target = $region13
    $region12: #{model_forward.1} parent=1 // pred_region
      %s33 = ssub.s32 64, 64
      %34 = vsyncadd [#allocation5], %s33
      %s36 = sshll.u32 [#allocation4], 4
      %s37 = int_to_ptr.vmem [resolvable:$true] %s36
      %39 = dma.hbm_to_vmem [thread:$0]  %s2, 64, %s37, [#allocation5]
    $region13: #{model_forward.1} parent=1 // pred_fallthru
      _
    // Predicated region
    $region14: #{model_forward.1} parent=1 // pred_check
      _
    $region15: #{model_forward.1} parent=1 // pred_check_branch
      %41 = sbr.rel (0) target = $region17
    $region16: #{model_forward.1} parent=1 // pred_region
      %s43 = ssub.s32 8192, 8192
      %44 = vsyncadd [#allocation5], %s43
      %s45 = sshll.u32 [#allocation6], 4
      %s46 = int_to_ptr.vmem [resolvable:$true] %s45
      %51 = dma.hbm_to_vmem [thread:$0]  %s3, 8192, %s46, [#allocation5], 128, 128, 8
    $region17: #{model_forward.1} parent=1 // pred_fallthru
      _
    // Predicated region
    $region18: #{model_forward.1} parent=1 // pred_check
      _
    $region19: #{model_forward.1} parent=1 // pred_check_branch
      %53 = sbr.rel (0) target = $region21
    $region20: #{model_forward.1} parent=1 // pred_region
      %s55 = ssub.s32 32, 32
      %56 = vsyncadd [#allocation8], %s55
      %s58 = sshll.u32 [#allocation7], 4
      %s59 = int_to_ptr.vmem [resolvable:$true] %s58
      %61 = dma.hbm_to_vmem [thread:$0]  %s4, 32, %s59, [#allocation8]
    $region21: #{model_forward.1} parent=1 // pred_fallthru
      _
    // Predicated region
    $region22: #{model_forward.1} parent=1 // pred_check
      _
    $region23: #{model_forward.1} parent=1 // pred_check_branch
      %63 = sbr.rel (0) target = $region25
    $region24: #{model_forward.1} parent=1 // pred_region
      %s65 = ssub.s32 6144, 6144
      %66 = vsyncadd [#allocation8], %s65
      %s67 = sshll.u32 [#allocation9], 4
      %s68 = int_to_ptr.vmem [resolvable:$true] %s67
      %73 = dma.hbm_to_vmem [thread:$0]  %s5, 6144, %s68, [#allocation8], 192, 192, 12
    $region25: #{model_forward.1} parent=1 // pred_fallthru
      _
    // Predicated region
    $region26: #{model_forward.1} parent=1 // pred_check
      _
    $region27: #{model_forward.1} parent=1 // pred_check_branch
      %75 = sbr.rel (0) target = $region29
    $region28: #{model_forward.1} parent=1 // pred_region
      %s77 = ssub.s32 48, 48
      %78 = vsyncadd [#allocation11], %s77
      %s80 = sshll.u32 [#allocation10], 4
      %s81 = int_to_ptr.vmem [resolvable:$true] %s80
      %83 = dma.hbm_to_vmem [thread:$0]  %s6, 48, %s81, [#allocation11]
    $region29: #{model_forward.1} parent=1 // pred_fallthru
      _
    // Predicated region
    $region30: #{model_forward.1} parent=1 // pred_check
      _
    $region31: #{model_forward.1} parent=1 // pred_check_branch
      %85 = sbr.rel (0) target = $region33
    $region32: #{model_forward.1} parent=1 // pred_region
      %86 = dma.done [#allocation3], 36864
    $region33: #{model_forward.1} parent=1 // pred_fallthru
      _
    // Predicated region
    $region34: #{model_forward.1} parent=1 // pred_check
      _
    $region35: #{model_forward.1} parent=1 // pred_check_branch
      %88 = sbr.rel (0) target = $region37
    $region36: #{model_forward.1} parent=1 // pred_region
      %89 = dma.done [#allocation5], 64
    $region37: #{model_forward.1} parent=1 // pred_fallthru
      _
    // Predicated region
    $region38: #{model_forward.1} parent=1 // pred_check
      _
    $region39: #{model_forward.1} parent=1 // pred_check_branch
      %91 = sbr.rel (0) target = $region41
    $region40: #{model_forward.1} parent=1 // pred_region
      %92 = dma.done [#allocation5], 8192
    $region41: #{model_forward.1} parent=1 // pred_fallthru
      _
    // Predicated region
    $region42: #{model_forward.1} parent=1 // pred_check
      _
    $region43: #{model_forward.1} parent=1 // pred_check_branch
      %94 = sbr.rel (0) target = $region45
    $region44: #{model_forward.1} parent=1 // pred_region
      %95 = dma.done [#allocation8], 32
    $region45: #{model_forward.1} parent=1 // pred_fallthru
      _
    // Predicated region
    $region46: #{model_forward.1} parent=1 // pred_check
      _
    $region47: #{model_forward.1} parent=1 // pred_check_branch
      %97 = sbr.rel (0) target = $region49
    $region48: #{model_forward.1} parent=1 // pred_region
      %98 = dma.done [#allocation8], 6144
    $region49: #{model_forward.1} parent=1 // pred_fallthru
      _
    // Predicated region
    $region50: #{model_forward.1} parent=1 // pred_check
      _
    $region51: #{model_forward.1} parent=1 // pred_check_branch
      %100 = sbr.rel (0) target = $region53
    $region52: #{model_forward.1} parent=1 // pred_region
      %101 = dma.done [#allocation11], 48
    $region53: #{model_forward.1} parent=1 // pred_fallthru
      _
    %v103 = vld [vmem:[%s0] sm:$0xff]
    %v104 = vld [vmem:[%s0 + $0x8] sm:$0xff]
    %v105 = vld [vmem:[%s0 + $0x10] sm:$0xff]
    %v106 = vld [vmem:[%s0 + $0x18] sm:$0xff]
    %v107 = vld [vmem:[%s0 + $0x20] sm:$0xf]
    %v108 = vld [vmem:[%s0 + $0x24] sm:$0xff]
    %v109 = vld [vmem:[%s0 + $0x2c] sm:$0xff]
    %v110 = vld [vmem:[%s0 + $0x34] sm:$0xff]
    %v111 = vld [vmem:[%s0 + $0x3c] sm:$0xff]
    %v112 = vld [vmem:[%s0 + $0x44] sm:$0xf]
    %v113 = vld [vmem:[#allocation2] sm:$0xff]
    %v114 = vld [vmem:[#allocation2 + $0x8] sm:$0xff]
    %v115 = vld [vmem:[#allocation2 + $0x10] sm:$0xff]
    %v116 = vld [vmem:[#allocation2 + $0x18] sm:$0xff]
    %v117 = vld [vmem:[#allocation2 + $0x20] sm:$0xff]
    %v118 = vld [vmem:[#allocation2 + $0x28] sm:$0xff]
    %v119 = vld [vmem:[#allocation2 + $0x30] sm:$0xff]
    %v120 = vld [vmem:[#allocation2 + $0x38] sm:$0xff]
    %v121 = vld [vmem:[#allocation2 + $0x40] sm:$0xff]
    %v122 = vld [vmem:[#allocation2 + $0x48] sm:$0xff]
    %v123 = vld [vmem:[#allocation2 + $0x50] sm:$0xff]
    %v124 = vld [vmem:[#allocation2 + $0x58] sm:$0xff]
    %v125 = vld [vmem:[#allocation2 + $0x60] sm:$0xff]
    %v126 = vld [vmem:[#allocation2 + $0x68] sm:$0xff]
    %v127 = vld [vmem:[#allocation2 + $0x70] sm:$0xff]
    %v128 = vld [vmem:[#allocation2 + $0x78] sm:$0xff]
    %v129 = vld [vmem:[#allocation2 + $0x80] sm:$0xff]
    %v130 = vld [vmem:[#allocation2 + $0x88] sm:$0xff]
    %v131 = vld [vmem:[#allocation2 + $0x90] sm:$0xff]
    %v132 = vld [vmem:[#allocation2 + $0x98] sm:$0xff]
    %v133 = vld [vmem:[#allocation2 + $0xa0] sm:$0xff]
    %v134 = vld [vmem:[#allocation2 + $0xa8] sm:$0xff]
    %v135 = vld [vmem:[#allocation2 + $0xb0] sm:$0xff]
    %v136 = vld [vmem:[#allocation2 + $0xb8] sm:$0xff]
    %v137 = vld [vmem:[#allocation2 + $0xc0] sm:$0xff]
    %v138 = vld [vmem:[#allocation2 + $0xc8] sm:$0xff]
    %v139 = vld [vmem:[#allocation2 + $0xd0] sm:$0xff]
    %v140 = vld [vmem:[#allocation2 + $0xd8] sm:$0xff]
    %v141 = vld [vmem:[#allocation2 + $0xe0] sm:$0xff]
    %v142 = vld [vmem:[#allocation2 + $0xe8] sm:$0xff]
    %v143 = vld [vmem:[#allocation2 + $0xf0] sm:$0xff]
    %v144 = vld [vmem:[#allocation2 + $0xf8] sm:$0xff]
    %v145 = vld [vmem:[#allocation2 + $0x100] sm:$0xff]
    %v146 = vld [vmem:[#allocation2 + $0x108] sm:$0xff]
    %v147 = vld [vmem:[#allocation2 + $0x110] sm:$0xff]
    %v148 = vld [vmem:[#allocation2 + $0x118] sm:$0xff]
    %v149 = vld [vmem:[#allocation2 + $0x120] sm:$0xff]
    %v150 = vld [vmem:[#allocation2 + $0x128] sm:$0xff]
    %v151 = vld [vmem:[#allocation2 + $0x130] sm:$0xff]
    %v152 = vld [vmem:[#allocation2 + $0x138] sm:$0xff]
    %v153 = vld [vmem:[#allocation2 + $0x140] sm:$0xff]
    %v154 = vld [vmem:[#allocation2 + $0x148] sm:$0xff]
    %v155 = vld [vmem:[#allocation2 + $0x150] sm:$0xff]
    %v156 = vld [vmem:[#allocation2 + $0x158] sm:$0xff]
    %v157 = vld [vmem:[#allocation2 + $0x160] sm:$0xff]
    %v158 = vld [vmem:[#allocation2 + $0x168] sm:$0xff]
    %v159 = vld [vmem:[#allocation2 + $0x170] sm:$0xff]
    %v160 = vld [vmem:[#allocation2 + $0x178] sm:$0xff]
    %v161 = vld [vmem:[#allocation2 + $0x180] sm:$0xff]
    %v162 = vld [vmem:[#allocation2 + $0x188] sm:$0xff]
    %v163 = vld [vmem:[#allocation2 + $0x190] sm:$0xff]
    %v164 = vld [vmem:[#allocation2 + $0x198] sm:$0xff]
    %v165 = vld [vmem:[#allocation2 + $0x1a0] sm:$0xff]
    %v166 = vld [vmem:[#allocation2 + $0x1a8] sm:$0xff]
    %v167 = vld [vmem:[#allocation2 + $0x1b0] sm:$0xff]
    %v168 = vld [vmem:[#allocation2 + $0x1b8] sm:$0xff]
    %v169 = vld [vmem:[#allocation2 + $0x1c0] sm:$0xff]
    %v170 = vld [vmem:[#allocation2 + $0x1c8] sm:$0xff]
    %v171 = vld [vmem:[#allocation2 + $0x1d0] sm:$0xff]
    %v172 = vld [vmem:[#allocation2 + $0x1d8] sm:$0xff]
    %v173 = vld [vmem:[#allocation2 + $0x1e0] sm:$0xff]
    %v174 = vld [vmem:[#allocation2 + $0x1e8] sm:$0xff]
    %v175 = vld [vmem:[#allocation2 + $0x1f0] sm:$0xff]
    %v176 = vld [vmem:[#allocation2 + $0x1f8] sm:$0xff]
    %v177 = vld [vmem:[#allocation2 + $0x200] sm:$0xff]
    %v178 = vld [vmem:[#allocation2 + $0x208] sm:$0xff]
    %v179 = vld [vmem:[#allocation2 + $0x210] sm:$0xff]
    %v180 = vld [vmem:[#allocation2 + $0x218] sm:$0xff]
    %v181 = vld [vmem:[#allocation2 + $0x220] sm:$0xff]
    %v182 = vld [vmem:[#allocation2 + $0x228] sm:$0xff]
    %v183 = vld [vmem:[#allocation2 + $0x230] sm:$0xff]
    %v184 = vld [vmem:[#allocation2 + $0x238] sm:$0xff]
    %v185 = vld [vmem:[#allocation2 + $0x240] sm:$0xff]
    %v186 = vld [vmem:[#allocation2 + $0x248] sm:$0xff]
    %v187 = vld [vmem:[#allocation2 + $0x250] sm:$0xff]
    %v188 = vld [vmem:[#allocation2 + $0x258] sm:$0xff]
    %v189 = vld [vmem:[#allocation2 + $0x260] sm:$0xff]
    %v190 = vld [vmem:[#allocation2 + $0x268] sm:$0xff]
    %v191 = vld [vmem:[#allocation2 + $0x270] sm:$0xff]
    %v192 = vld [vmem:[#allocation2 + $0x278] sm:$0xff]
    %v193 = vld [vmem:[#allocation2 + $0x280] sm:$0xff]
    %v194 = vld [vmem:[#allocation2 + $0x288] sm:$0xff]
    %v195 = vld [vmem:[#allocation2 + $0x290] sm:$0xff]
    %v196 = vld [vmem:[#allocation2 + $0x298] sm:$0xff]
    %v197 = vld [vmem:[#allocation2 + $0x2a0] sm:$0xff]
    %v198 = vld [vmem:[#allocation2 + $0x2a8] sm:$0xff]
    %v199 = vld [vmem:[#allocation2 + $0x2b0] sm:$0xff]
    %v200 = vld [vmem:[#allocation2 + $0x2b8] sm:$0xff]
    %v201 = vld [vmem:[#allocation2 + $0x2c0] sm:$0xff]
    %v202 = vld [vmem:[#allocation2 + $0x2c8] sm:$0xff]
    %v203 = vld [vmem:[#allocation2 + $0x2d0] sm:$0xff]
    %v204 = vld [vmem:[#allocation2 + $0x2d8] sm:$0xff]
    %v205 = vld [vmem:[#allocation2 + $0x2e0] sm:$0xff]
    %v206 = vld [vmem:[#allocation2 + $0x2e8] sm:$0xff]
    %v207 = vld [vmem:[#allocation2 + $0x2f0] sm:$0xff]
    %v208 = vld [vmem:[#allocation2 + $0x2f8] sm:$0xff]
    %v209 = vld [vmem:[#allocation2 + $0x300] sm:$0xff]
    %v210 = vld [vmem:[#allocation2 + $0x308] sm:$0xff]
    %v211 = vld [vmem:[#allocation2 + $0x310] sm:$0xff]
    %v212 = vld [vmem:[#allocation2 + $0x318] sm:$0xff]
    %v213 = vld [vmem:[#allocation2 + $0x320] sm:$0xff]
    %v214 = vld [vmem:[#allocation2 + $0x328] sm:$0xff]
    %v215 = vld [vmem:[#allocation2 + $0x330] sm:$0xff]
    %v216 = vld [vmem:[#allocation2 + $0x338] sm:$0xff]
    %v217 = vld [vmem:[#allocation2 + $0x340] sm:$0xff]
    %v218 = vld [vmem:[#allocation2 + $0x348] sm:$0xff]
    %v219 = vld [vmem:[#allocation2 + $0x350] sm:$0xff]
    %v220 = vld [vmem:[#allocation2 + $0x358] sm:$0xff]
    %v221 = vld [vmem:[#allocation2 + $0x360] sm:$0xff]
    %v222 = vld [vmem:[#allocation2 + $0x368] sm:$0xff]
    %v223 = vld [vmem:[#allocation2 + $0x370] sm:$0xff]
    %v224 = vld [vmem:[#allocation2 + $0x378] sm:$0xff]
    %v225 = vld [vmem:[#allocation2 + $0x380] sm:$0xff]
    %v226 = vld [vmem:[#allocation2 + $0x388] sm:$0xff]
    %v227 = vld [vmem:[#allocation2 + $0x390] sm:$0xff]
    %v228 = vld [vmem:[#allocation2 + $0x398] sm:$0xff]
    %v229 = vld [vmem:[#allocation2 + $0x3a0] sm:$0xff]
    %v230 = vld [vmem:[#allocation2 + $0x3a8] sm:$0xff]
    %v231 = vld [vmem:[#allocation2 + $0x3b0] sm:$0xff]
    %v232 = vld [vmem:[#allocation2 + $0x3b8] sm:$0xff]
    %v233 = vld [vmem:[#allocation2 + $0x3c0] sm:$0xff]
    %v234 = vld [vmem:[#allocation2 + $0x3c8] sm:$0xff]
    %v235 = vld [vmem:[#allocation2 + $0x3d0] sm:$0xff]
    %v236 = vld [vmem:[#allocation2 + $0x3d8] sm:$0xff]
    %v237 = vld [vmem:[#allocation2 + $0x3e0] sm:$0xff]
    %v238 = vld [vmem:[#allocation2 + $0x3e8] sm:$0xff]
    %v239 = vld [vmem:[#allocation2 + $0x3f0] sm:$0xff]
    %v240 = vld [vmem:[#allocation2 + $0x3f8] sm:$0xff]
    %v241 = vld [vmem:[#allocation2 + $0x400] sm:$0xff]
    %v242 = vld [vmem:[#allocation2 + $0x408] sm:$0xff]
    %v243 = vld [vmem:[#allocation2 + $0x410] sm:$0xff]
    %v244 = vld [vmem:[#allocation2 + $0x418] sm:$0xff]
    %v245 = vld [vmem:[#allocation2 + $0x420] sm:$0xff]
    %v246 = vld [vmem:[#allocation2 + $0x428] sm:$0xff]
    %v247 = vld [vmem:[#allocation2 + $0x430] sm:$0xff]
    %v248 = vld [vmem:[#allocation2 + $0x438] sm:$0xff]
    %v249 = vld [vmem:[#allocation2 + $0x440] sm:$0xff]
    %v250 = vld [vmem:[#allocation2 + $0x448] sm:$0xff]
    %v251 = vld [vmem:[#allocation2 + $0x450] sm:$0xff]
    %v252 = vld [vmem:[#allocation2 + $0x458] sm:$0xff]
    %v253 = vld [vmem:[#allocation2 + $0x460] sm:$0xff]
    %v254 = vld [vmem:[#allocation2 + $0x468] sm:$0xff]
    %v255 = vld [vmem:[#allocation2 + $0x470] sm:$0xff]
    %v256 = vld [vmem:[#allocation2 + $0x478] sm:$0xff]
    %v257 = vld [vmem:[#allocation2 + $0x480] sm:$0xff]
    %v258 = vld [vmem:[#allocation2 + $0x488] sm:$0xff]
    %v259 = vld [vmem:[#allocation2 + $0x490] sm:$0xff]
    %v260 = vld [vmem:[#allocation2 + $0x498] sm:$0xff]
    %v261 = vld [vmem:[#allocation2 + $0x4a0] sm:$0xff]
    %v262 = vld [vmem:[#allocation2 + $0x4a8] sm:$0xff]
    %v263 = vld [vmem:[#allocation2 + $0x4b0] sm:$0xff]
    %v264 = vld [vmem:[#allocation2 + $0x4b8] sm:$0xff]
    %v265 = vld [vmem:[#allocation2 + $0x4c0] sm:$0xff]
    %v266 = vld [vmem:[#allocation2 + $0x4c8] sm:$0xff]
    %v267 = vld [vmem:[#allocation2 + $0x4d0] sm:$0xff]
    %v268 = vld [vmem:[#allocation2 + $0x4d8] sm:$0xff]
    %v269 = vld [vmem:[#allocation2 + $0x4e0] sm:$0xff]
    %v270 = vld [vmem:[#allocation2 + $0x4e8] sm:$0xff]
    %v271 = vld [vmem:[#allocation2 + $0x4f0] sm:$0xff]
    %v272 = vld [vmem:[#allocation2 + $0x4f8] sm:$0xff]
    %v273 = vld [vmem:[#allocation2 + $0x500] sm:$0xff]
    %v274 = vld [vmem:[#allocation2 + $0x508] sm:$0xff]
    %v275 = vld [vmem:[#allocation2 + $0x510] sm:$0xff]
    %v276 = vld [vmem:[#allocation2 + $0x518] sm:$0xff]
    %v277 = vld [vmem:[#allocation2 + $0x520] sm:$0xff]
    %v278 = vld [vmem:[#allocation2 + $0x528] sm:$0xff]
    %v279 = vld [vmem:[#allocation2 + $0x530] sm:$0xff]
    %v280 = vld [vmem:[#allocation2 + $0x538] sm:$0xff]
    %v281 = vld [vmem:[#allocation2 + $0x540] sm:$0xff]
    %v282 = vld [vmem:[#allocation2 + $0x548] sm:$0xff]
    %v283 = vld [vmem:[#allocation2 + $0x550] sm:$0xff]
    %v284 = vld [vmem:[#allocation2 + $0x558] sm:$0xff]
    %v285 = vld [vmem:[#allocation2 + $0x560] sm:$0xff]
    %v286 = vld [vmem:[#allocation2 + $0x568] sm:$0xff]
    %v287 = vld [vmem:[#allocation2 + $0x570] sm:$0xff]
    %v288 = vld [vmem:[#allocation2 + $0x578] sm:$0xff]
    %v289 = vld [vmem:[#allocation2 + $0x580] sm:$0xff]
    %v290 = vld [vmem:[#allocation2 + $0x588] sm:$0xff]
    %v291 = vld [vmem:[#allocation2 + $0x590] sm:$0xff]
    %v292 = vld [vmem:[#allocation2 + $0x598] sm:$0xff]
    %v293 = vld [vmem:[#allocation2 + $0x5a0] sm:$0xff]
    %v294 = vld [vmem:[#allocation2 + $0x5a8] sm:$0xff]
    %v295 = vld [vmem:[#allocation2 + $0x5b0] sm:$0xff]
    %v296 = vld [vmem:[#allocation2 + $0x5b8] sm:$0xff]
    %v297 = vld [vmem:[#allocation2 + $0x5c0] sm:$0xff]
    %v298 = vld [vmem:[#allocation2 + $0x5c8] sm:$0xff]
    %v299 = vld [vmem:[#allocation2 + $0x5d0] sm:$0xff]
    %v300 = vld [vmem:[#allocation2 + $0x5d8] sm:$0xff]
    %v301 = vld [vmem:[#allocation2 + $0x5e0] sm:$0xff]
    %v302 = vld [vmem:[#allocation2 + $0x5e8] sm:$0xff]
    %v303 = vld [vmem:[#allocation2 + $0x5f0] sm:$0xff]
    %v304 = vld [vmem:[#allocation2 + $0x5f8] sm:$0xff]
    %v305 = vld [vmem:[#allocation2 + $0x600] sm:$0xff]
    %v306 = vld [vmem:[#allocation2 + $0x608] sm:$0xff]
    %v307 = vld [vmem:[#allocation2 + $0x610] sm:$0xff]
    %v308 = vld [vmem:[#allocation2 + $0x618] sm:$0xff]
    %v309 = vld [vmem:[#allocation2 + $0x620] sm:$0xff]
    %v310 = vld [vmem:[#allocation2 + $0x628] sm:$0xff]
    %v311 = vld [vmem:[#allocation2 + $0x630] sm:$0xff]
    %v312 = vld [vmem:[#allocation2 + $0x638] sm:$0xff]
    %v313 = vld [vmem:[#allocation2 + $0x640] sm:$0xff]
    %v314 = vld [vmem:[#allocation2 + $0x648] sm:$0xff]
    %v315 = vld [vmem:[#allocation2 + $0x650] sm:$0xff]
    %v316 = vld [vmem:[#allocation2 + $0x658] sm:$0xff]
    %v317 = vld [vmem:[#allocation2 + $0x660] sm:$0xff]
    %v318 = vld [vmem:[#allocation2 + $0x668] sm:$0xff]
    %v319 = vld [vmem:[#allocation2 + $0x670] sm:$0xff]
    %v320 = vld [vmem:[#allocation2 + $0x678] sm:$0xff]
    %v321 = vld [vmem:[#allocation2 + $0x680] sm:$0xff]
    %v322 = vld [vmem:[#allocation2 + $0x688] sm:$0xff]
    %v323 = vld [vmem:[#allocation2 + $0x690] sm:$0xff]
    %v324 = vld [vmem:[#allocation2 + $0x698] sm:$0xff]
    %v325 = vld [vmem:[#allocation2 + $0x6a0] sm:$0xff]
    %v326 = vld [vmem:[#allocation2 + $0x6a8] sm:$0xff]
    %v327 = vld [vmem:[#allocation2 + $0x6b0] sm:$0xff]
    %v328 = vld [vmem:[#allocation2 + $0x6b8] sm:$0xff]
    %v329 = vld [vmem:[#allocation2 + $0x6c0] sm:$0xff]
    %v330 = vld [vmem:[#allocation2 + $0x6c8] sm:$0xff]
    %v331 = vld [vmem:[#allocation2 + $0x6d0] sm:$0xff]
    %v332 = vld [vmem:[#allocation2 + $0x6d8] sm:$0xff]
    %v333 = vld [vmem:[#allocation2 + $0x6e0] sm:$0xff]
    %v334 = vld [vmem:[#allocation2 + $0x6e8] sm:$0xff]
    %v335 = vld [vmem:[#allocation2 + $0x6f0] sm:$0xff]
    %v336 = vld [vmem:[#allocation2 + $0x6f8] sm:$0xff]
    %v337 = vld [vmem:[#allocation2 + $0x700] sm:$0xff]
    %v338 = vld [vmem:[#allocation2 + $0x708] sm:$0xff]
    %v339 = vld [vmem:[#allocation2 + $0x710] sm:$0xff]
    %v340 = vld [vmem:[#allocation2 + $0x718] sm:$0xff]
    %v341 = vld [vmem:[#allocation2 + $0x720] sm:$0xff]
    %v342 = vld [vmem:[#allocation2 + $0x728] sm:$0xff]
    %v343 = vld [vmem:[#allocation2 + $0x730] sm:$0xff]
    %v344 = vld [vmem:[#allocation2 + $0x738] sm:$0xff]
    %v345 = vld [vmem:[#allocation2 + $0x740] sm:$0xff]
    %v346 = vld [vmem:[#allocation2 + $0x748] sm:$0xff]
    %v347 = vld [vmem:[#allocation2 + $0x750] sm:$0xff]
    %v348 = vld [vmem:[#allocation2 + $0x758] sm:$0xff]
    %v349 = vld [vmem:[#allocation2 + $0x760] sm:$0xff]
    %v350 = vld [vmem:[#allocation2 + $0x768] sm:$0xff]
    %v351 = vld [vmem:[#allocation2 + $0x770] sm:$0xff]
    %v352 = vld [vmem:[#allocation2 + $0x778] sm:$0xff]
    %v353 = vld [vmem:[#allocation2 + $0x780] sm:$0xff]
    %v354 = vld [vmem:[#allocation2 + $0x788] sm:$0xff]
    %v355 = vld [vmem:[#allocation2 + $0x790] sm:$0xff]
    %v356 = vld [vmem:[#allocation2 + $0x798] sm:$0xff]
    %v357 = vld [vmem:[#allocation2 + $0x7a0] sm:$0xff]
    %v358 = vld [vmem:[#allocation2 + $0x7a8] sm:$0xff]
    %v359 = vld [vmem:[#allocation2 + $0x7b0] sm:$0xff]
    %v360 = vld [vmem:[#allocation2 + $0x7b8] sm:$0xff]
    %v361 = vld [vmem:[#allocation2 + $0x7c0] sm:$0xff]
    %v362 = vld [vmem:[#allocation2 + $0x7c8] sm:$0xff]
    %v363 = vld [vmem:[#allocation2 + $0x7d0] sm:$0xff]
    %v364 = vld [vmem:[#allocation2 + $0x7d8] sm:$0xff]
    %v365 = vld [vmem:[#allocation2 + $0x7e0] sm:$0xff]
    %v366 = vld [vmem:[#allocation2 + $0x7e8] sm:$0xff]
    %v367 = vld [vmem:[#allocation2 + $0x7f0] sm:$0xff]
    %v368 = vld [vmem:[#allocation2 + $0x7f8] sm:$0xff]
    %v369 = vld [vmem:[#allocation2 + $0x800] sm:$0xff]
    %v370 = vld [vmem:[#allocation2 + $0x808] sm:$0xff]
    %v371 = vld [vmem:[#allocation2 + $0x810] sm:$0xff]
    %v372 = vld [vmem:[#allocation2 + $0x818] sm:$0xff]
    %v373 = vld [vmem:[#allocation2 + $0x820] sm:$0xff]
    %v374 = vld [vmem:[#allocation2 + $0x828] sm:$0xff]
    %v375 = vld [vmem:[#allocation2 + $0x830] sm:$0xff]
    %v376 = vld [vmem:[#allocation2 + $0x838] sm:$0xff]
    %v377 = vld [vmem:[#allocation2 + $0x840] sm:$0xff]
    %v378 = vld [vmem:[#allocation2 + $0x848] sm:$0xff]
    %v379 = vld [vmem:[#allocation2 + $0x850] sm:$0xff]
    %v380 = vld [vmem:[#allocation2 + $0x858] sm:$0xff]
    %v381 = vld [vmem:[#allocation2 + $0x860] sm:$0xff]
    %v382 = vld [vmem:[#allocation2 + $0x868] sm:$0xff]
    %v383 = vld [vmem:[#allocation2 + $0x870] sm:$0xff]
    %v384 = vld [vmem:[#allocation2 + $0x878] sm:$0xff]
    %v385 = vld [vmem:[#allocation2 + $0x880] sm:$0xff]
    %v386 = vld [vmem:[#allocation2 + $0x888] sm:$0xff]
    %v387 = vld [vmem:[#allocation2 + $0x890] sm:$0xff]
    %v388 = vld [vmem:[#allocation2 + $0x898] sm:$0xff]
    %v389 = vld [vmem:[#allocation2 + $0x8a0] sm:$0xff]
    %v390 = vld [vmem:[#allocation2 + $0x8a8] sm:$0xff]
    %v391 = vld [vmem:[#allocation2 + $0x8b0] sm:$0xff]
    %v392 = vld [vmem:[#allocation2 + $0x8b8] sm:$0xff]
    %v393 = vld [vmem:[#allocation2 + $0x8c0] sm:$0xff]
    %v394 = vld [vmem:[#allocation2 + $0x8c8] sm:$0xff]
    %v395 = vld [vmem:[#allocation2 + $0x8d0] sm:$0xff]
    %v396 = vld [vmem:[#allocation2 + $0x8d8] sm:$0xff]
    %v397 = vld [vmem:[#allocation2 + $0x8e0] sm:$0xff]
    %v398 = vld [vmem:[#allocation2 + $0x8e8] sm:$0xff]
    %v399 = vld [vmem:[#allocation2 + $0x8f0] sm:$0xff]
    %v400 = vld [vmem:[#allocation2 + $0x8f8] sm:$0xff]
    %v401 = vld [vmem:[#allocation4] sm:$0xf]
    %v403 = vlaneseq
    %v404 = vshrl.u32 %v403, 7
    %v405 = vsub.s32 0, %v404
    %v406 = vrot.slane %v401, %v405
    %v407 = vlaneseq
    %v408 = vshrl.u32 %v407, 7
    %v409 = vsub.s32 1, %v408
    %v410 = vrot.slane %v401, %v409
    %v411 = vlaneseq
    %v412 = vshrl.u32 %v411, 7
    %v413 = vsub.s32 2, %v412
    %v414 = vrot.slane %v401, %v413
    %v415 = vlaneseq
    %v416 = vshrl.u32 %v415, 7
    %v417 = vsub.s32 3, %v416
    %v418 = vrot.slane %v401, %v417
    %v433 = vunpack.c.l.b16 %v103
    %v434 = vunpack.c.h.b16 %v103
    %v435 = vunpack.c.l.b16 %v104
    %v436 = vunpack.c.h.b16 %v104
    %v437 = vunpack.c.l.b16 %v105
    %v438 = vunpack.c.h.b16 %v105
    %v439 = vunpack.c.l.b16 %v106
    %v440 = vunpack.c.h.b16 %v106
    %v441 = vunpack.c.l.b16 %v107
    %v442 = vunpack.c.l.b16 %v108
    %v443 = vunpack.c.h.b16 %v108
    %v444 = vunpack.c.l.b16 %v109
    %v445 = vunpack.c.h.b16 %v109
    %v446 = vunpack.c.l.b16 %v110
    %v447 = vunpack.c.h.b16 %v110
    %v448 = vunpack.c.l.b16 %v111
    %v449 = vunpack.c.h.b16 %v111
    %v450 = vunpack.c.l.b16 %v112
    %v451 = vpack.c.b16 %v442, %v433
    %v452 = vpack.c.b16 %v443, %v434
    %v453 = vpack.c.b16 %v444, %v435
    %v454 = vpack.c.b16 %v445, %v436
    %v455 = vpack.c.b16 %v446, %v437
    %v456 = vpack.c.b16 %v447, %v438
    %v457 = vpack.c.b16 %v448, %v439
    %v458 = vpack.c.b16 %v449, %v440
    %v459 = vpack.c.b16 %v450, %v441
    %v757 = vunpack.c.l.b16 %v113
    %v758 = vunpack.c.h.b16 %v113
    %v759 = vunpack.c.l.b16 %v114
    %v760 = vunpack.c.h.b16 %v114
    %v761 = vunpack.c.l.b16 %v115
    %v762 = vunpack.c.h.b16 %v115
    %v763 = vunpack.c.l.b16 %v116
    %v764 = vunpack.c.h.b16 %v116
    %v765 = vunpack.c.l.b16 %v117
    %v766 = vunpack.c.h.b16 %v117
    %v767 = vunpack.c.l.b16 %v118
    %v768 = vunpack.c.h.b16 %v118
    %v769 = vunpack.c.l.b16 %v119
    %v770 = vunpack.c.h.b16 %v119
    %v771 = vunpack.c.l.b16 %v120
    %v772 = vunpack.c.h.b16 %v120
    %v773 = vunpack.c.l.b16 %v121
    %v774 = vunpack.c.h.b16 %v121
    %v775 = vunpack.c.l.b16 %v122
    %v776 = vunpack.c.h.b16 %v122
    %v777 = vunpack.c.l.b16 %v123
    %v778 = vunpack.c.h.b16 %v123
    %v779 = vunpack.c.l.b16 %v124
    %v780 = vunpack.c.h.b16 %v124
    %v781 = vunpack.c.l.b16 %v125
    %v782 = vunpack.c.h.b16 %v125
    %v783 = vunpack.c.l.b16 %v126
    %v784 = vunpack.c.h.b16 %v126
    %v785 = vunpack.c.l.b16 %v127
    %v786 = vunpack.c.h.b16 %v127
    %v787 = vunpack.c.l.b16 %v128
    %v788 = vunpack.c.h.b16 %v128
    %v789 = vunpack.c.l.b16 %v129
    %v790 = vunpack.c.h.b16 %v129
    %v791 = vunpack.c.l.b16 %v130
    %v792 = vunpack.c.h.b16 %v130
    %v793 = vunpack.c.l.b16 %v131
    %v794 = vunpack.c.h.b16 %v131
    %v795 = vunpack.c.l.b16 %v132
    %v796 = vunpack.c.h.b16 %v132
    %v797 = vunpack.c.l.b16 %v133
    %v798 = vunpack.c.h.b16 %v133
    %v799 = vunpack.c.l.b16 %v134
    %v800 = vunpack.c.h.b16 %v134
    %v801 = vunpack.c.l.b16 %v135
    %v802 = vunpack.c.h.b16 %v135
    %v803 = vunpack.c.l.b16 %v136
    %v804 = vunpack.c.h.b16 %v136
    %v805 = vunpack.c.l.b16 %v137
    %v806 = vunpack.c.h.b16 %v137
    %v807 = vunpack.c.l.b16 %v138
    %v808 = vunpack.c.h.b16 %v138
    %v809 = vunpack.c.l.b16 %v139
    %v810 = vunpack.c.h.b16 %v139
    %v811 = vunpack.c.l.b16 %v140
    %v812 = vunpack.c.h.b16 %v140
    %v813 = vunpack.c.l.b16 %v141
    %v814 = vunpack.c.h.b16 %v141
    %v815 = vunpack.c.l.b16 %v142
    %v816 = vunpack.c.h.b16 %v142
    %v817 = vunpack.c.l.b16 %v143
    %v818 = vunpack.c.h.b16 %v143
    %v819 = vunpack.c.l.b16 %v144
    %v820 = vunpack.c.h.b16 %v144
    %v821 = vunpack.c.l.b16 %v145
    %v822 = vunpack.c.h.b16 %v145
    %v823 = vunpack.c.l.b16 %v146
    %v824 = vunpack.c.h.b16 %v146
    %v825 = vunpack.c.l.b16 %v147
    %v826 = vunpack.c.h.b16 %v147
    %v827 = vunpack.c.l.b16 %v148
    %v828 = vunpack.c.h.b16 %v148
    %v829 = vunpack.c.l.b16 %v149
    %v830 = vunpack.c.h.b16 %v149
    %v831 = vunpack.c.l.b16 %v150
    %v832 = vunpack.c.h.b16 %v150
    %v833 = vunpack.c.l.b16 %v151
    %v834 = vunpack.c.h.b16 %v151
    %v835 = vunpack.c.l.b16 %v152
    %v836 = vunpack.c.h.b16 %v152
    %v837 = vunpack.c.l.b16 %v153
    %v838 = vunpack.c.h.b16 %v153
    %v839 = vunpack.c.l.b16 %v154
    %v840 = vunpack.c.h.b16 %v154
    %v841 = vunpack.c.l.b16 %v155
    %v842 = vunpack.c.h.b16 %v155
    %v843 = vunpack.c.l.b16 %v156
    %v844 = vunpack.c.h.b16 %v156
    %v845 = vunpack.c.l.b16 %v157
    %v846 = vunpack.c.h.b16 %v157
    %v847 = vunpack.c.l.b16 %v158
    %v848 = vunpack.c.h.b16 %v158
    %v849 = vunpack.c.l.b16 %v159
    %v850 = vunpack.c.h.b16 %v159
    %v851 = vunpack.c.l.b16 %v160
    %v852 = vunpack.c.h.b16 %v160
    %v853 = vunpack.c.l.b16 %v161
    %v854 = vunpack.c.h.b16 %v161
    %v855 = vunpack.c.l.b16 %v162
    %v856 = vunpack.c.h.b16 %v162
    %v857 = vunpack.c.l.b16 %v163
    %v858 = vunpack.c.h.b16 %v163
    %v859 = vunpack.c.l.b16 %v164
    %v860 = vunpack.c.h.b16 %v164
    %v861 = vunpack.c.l.b16 %v165
    %v862 = vunpack.c.h.b16 %v165
    %v863 = vunpack.c.l.b16 %v166
    %v864 = vunpack.c.h.b16 %v166
    %v865 = vunpack.c.l.b16 %v167
    %v866 = vunpack.c.h.b16 %v167
    %v867 = vunpack.c.l.b16 %v168
    %v868 = vunpack.c.h.b16 %v168
    %v869 = vunpack.c.l.b16 %v169
    %v870 = vunpack.c.h.b16 %v169
    %v871 = vunpack.c.l.b16 %v170
    %v872 = vunpack.c.h.b16 %v170
    %v873 = vunpack.c.l.b16 %v171
    %v874 = vunpack.c.h.b16 %v171
    %v875 = vunpack.c.l.b16 %v172
    %v876 = vunpack.c.h.b16 %v172
    %v877 = vunpack.c.l.b16 %v173
    %v878 = vunpack.c.h.b16 %v173
    %v879 = vunpack.c.l.b16 %v174
    %v880 = vunpack.c.h.b16 %v174
    %v881 = vunpack.c.l.b16 %v175
    %v882 = vunpack.c.h.b16 %v175
    %v883 = vunpack.c.l.b16 %v176
    %v884 = vunpack.c.h.b16 %v176
    %v885 = vunpack.c.l.b16 %v177
    %v886 = vunpack.c.h.b16 %v177
    %v887 = vunpack.c.l.b16 %v178
    %v888 = vunpack.c.h.b16 %v178
    %v889 = vunpack.c.l.b16 %v179
    %v890 = vunpack.c.h.b16 %v179
    %v891 = vunpack.c.l.b16 %v180
    %v892 = vunpack.c.h.b16 %v180
    %v893 = vunpack.c.l.b16 %v181
    %v894 = vunpack.c.h.b16 %v181
    %v895 = vunpack.c.l.b16 %v182
    %v896 = vunpack.c.h.b16 %v182
    %v897 = vunpack.c.l.b16 %v183
    %v898 = vunpack.c.h.b16 %v183
    %v899 = vunpack.c.l.b16 %v184
    %v900 = vunpack.c.h.b16 %v184
    %v901 = vunpack.c.l.b16 %v185
    %v902 = vunpack.c.h.b16 %v185
    %v903 = vunpack.c.l.b16 %v186
    %v904 = vunpack.c.h.b16 %v186
    %v905 = vunpack.c.l.b16 %v187
    %v906 = vunpack.c.h.b16 %v187
    %v907 = vunpack.c.l.b16 %v188
    %v908 = vunpack.c.h.b16 %v188
    %v909 = vunpack.c.l.b16 %v189
    %v910 = vunpack.c.h.b16 %v189
    %v911 = vunpack.c.l.b16 %v190
    %v912 = vunpack.c.h.b16 %v190
    %v913 = vunpack.c.l.b16 %v191
    %v914 = vunpack.c.h.b16 %v191
    %v915 = vunpack.c.l.b16 %v192
    %v916 = vunpack.c.h.b16 %v192
    %v917 = vunpack.c.l.b16 %v193
    %v918 = vunpack.c.h.b16 %v193
    %v919 = vunpack.c.l.b16 %v194
    %v920 = vunpack.c.h.b16 %v194
    %v921 = vunpack.c.l.b16 %v195
    %v922 = vunpack.c.h.b16 %v195
    %v923 = vunpack.c.l.b16 %v196
    %v924 = vunpack.c.h.b16 %v196
    %v925 = vunpack.c.l.b16 %v197
    %v926 = vunpack.c.h.b16 %v197
    %v927 = vunpack.c.l.b16 %v198
    %v928 = vunpack.c.h.b16 %v198
    %v929 = vunpack.c.l.b16 %v199
    %v930 = vunpack.c.h.b16 %v199
    %v931 = vunpack.c.l.b16 %v200
    %v932 = vunpack.c.h.b16 %v200
    %v933 = vunpack.c.l.b16 %v201
    %v934 = vunpack.c.h.b16 %v201
    %v935 = vunpack.c.l.b16 %v202
    %v936 = vunpack.c.h.b16 %v202
    %v937 = vunpack.c.l.b16 %v203
    %v938 = vunpack.c.h.b16 %v203
    %v939 = vunpack.c.l.b16 %v204
    %v940 = vunpack.c.h.b16 %v204
    %v941 = vunpack.c.l.b16 %v205
    %v942 = vunpack.c.h.b16 %v205
    %v943 = vunpack.c.l.b16 %v206
    %v944 = vunpack.c.h.b16 %v206
    %v945 = vunpack.c.l.b16 %v207
    %v946 = vunpack.c.h.b16 %v207
    %v947 = vunpack.c.l.b16 %v208
    %v948 = vunpack.c.h.b16 %v208
    %v949 = vunpack.c.l.b16 %v209
    %v950 = vunpack.c.h.b16 %v209
    %v951 = vunpack.c.l.b16 %v210
    %v952 = vunpack.c.h.b16 %v210
    %v953 = vunpack.c.l.b16 %v211
    %v954 = vunpack.c.h.b16 %v211
    %v955 = vunpack.c.l.b16 %v212
    %v956 = vunpack.c.h.b16 %v212
    %v957 = vunpack.c.l.b16 %v213
    %v958 = vunpack.c.h.b16 %v213
    %v959 = vunpack.c.l.b16 %v214
    %v960 = vunpack.c.h.b16 %v214
    %v961 = vunpack.c.l.b16 %v215
    %v962 = vunpack.c.h.b16 %v215
    %v963 = vunpack.c.l.b16 %v216
    %v964 = vunpack.c.h.b16 %v216
    %v965 = vunpack.c.l.b16 %v217
    %v966 = vunpack.c.h.b16 %v217
    %v967 = vunpack.c.l.b16 %v218
    %v968 = vunpack.c.h.b16 %v218
    %v969 = vunpack.c.l.b16 %v219
    %v970 = vunpack.c.h.b16 %v219
    %v971 = vunpack.c.l.b16 %v220
    %v972 = vunpack.c.h.b16 %v220
    %v973 = vunpack.c.l.b16 %v221
    %v974 = vunpack.c.h.b16 %v221
    %v975 = vunpack.c.l.b16 %v222
    %v976 = vunpack.c.h.b16 %v222
    %v977 = vunpack.c.l.b16 %v223
    %v978 = vunpack.c.h.b16 %v223
    %v979 = vunpack.c.l.b16 %v224
    %v980 = vunpack.c.h.b16 %v224
    %v981 = vunpack.c.l.b16 %v225
    %v982 = vunpack.c.h.b16 %v225
    %v983 = vunpack.c.l.b16 %v226
    %v984 = vunpack.c.h.b16 %v226
    %v985 = vunpack.c.l.b16 %v227
    %v986 = vunpack.c.h.b16 %v227
    %v987 = vunpack.c.l.b16 %v228
    %v988 = vunpack.c.h.b16 %v228
    %v989 = vunpack.c.l.b16 %v229
    %v990 = vunpack.c.h.b16 %v229
    %v991 = vunpack.c.l.b16 %v230
    %v992 = vunpack.c.h.b16 %v230
    %v993 = vunpack.c.l.b16 %v231
    %v994 = vunpack.c.h.b16 %v231
    %v995 = vunpack.c.l.b16 %v232
    %v996 = vunpack.c.h.b16 %v232
    %v997 = vunpack.c.l.b16 %v233
    %v998 = vunpack.c.h.b16 %v233
    %v999 = vunpack.c.l.b16 %v234
    %v1000 = vunpack.c.h.b16 %v234
    %v1001 = vunpack.c.l.b16 %v235
    %v1002 = vunpack.c.h.b16 %v235
    %v1003 = vunpack.c.l.b16 %v236
    %v1004 = vunpack.c.h.b16 %v236
    %v1005 = vunpack.c.l.b16 %v237
    %v1006 = vunpack.c.h.b16 %v237
    %v1007 = vunpack.c.l.b16 %v238
    %v1008 = vunpack.c.h.b16 %v238
    %v1009 = vunpack.c.l.b16 %v239
    %v1010 = vunpack.c.h.b16 %v239
    %v1011 = vunpack.c.l.b16 %v240
    %v1012 = vunpack.c.h.b16 %v240
    %v1013 = vunpack.c.l.b16 %v241
    %v1014 = vunpack.c.h.b16 %v241
    %v1015 = vunpack.c.l.b16 %v242
    %v1016 = vunpack.c.h.b16 %v242
    %v1017 = vunpack.c.l.b16 %v243
    %v1018 = vunpack.c.h.b16 %v243
    %v1019 = vunpack.c.l.b16 %v244
    %v1020 = vunpack.c.h.b16 %v244
    %v1021 = vunpack.c.l.b16 %v245
    %v1022 = vunpack.c.h.b16 %v245
    %v1023 = vunpack.c.l.b16 %v246
    %v1024 = vunpack.c.h.b16 %v246
    %v1025 = vunpack.c.l.b16 %v247
    %v1026 = vunpack.c.h.b16 %v247
    %v1027 = vunpack.c.l.b16 %v248
    %v1028 = vunpack.c.h.b16 %v248
    %v1029 = vunpack.c.l.b16 %v249
    %v1030 = vunpack.c.h.b16 %v249
    %v1031 = vunpack.c.l.b16 %v250
    %v1032 = vunpack.c.h.b16 %v250
    %v1033 = vunpack.c.l.b16 %v251
    %v1034 = vunpack.c.h.b16 %v251
    %v1035 = vunpack.c.l.b16 %v252
    %v1036 = vunpack.c.h.b16 %v252
    %v1037 = vunpack.c.l.b16 %v253
    %v1038 = vunpack.c.h.b16 %v253
    %v1039 = vunpack.c.l.b16 %v254
    %v1040 = vunpack.c.h.b16 %v254
    %v1041 = vunpack.c.l.b16 %v255
    %v1042 = vunpack.c.h.b16 %v255
    %v1043 = vunpack.c.l.b16 %v256
    %v1044 = vunpack.c.h.b16 %v256
    %v1045 = vunpack.c.l.b16 %v257
    %v1046 = vunpack.c.h.b16 %v257
    %v1047 = vunpack.c.l.b16 %v258
    %v1048 = vunpack.c.h.b16 %v258
    %v1049 = vunpack.c.l.b16 %v259
    %v1050 = vunpack.c.h.b16 %v259
    %v1051 = vunpack.c.l.b16 %v260
    %v1052 = vunpack.c.h.b16 %v260
    %v1053 = vunpack.c.l.b16 %v261
    %v1054 = vunpack.c.h.b16 %v261
    %v1055 = vunpack.c.l.b16 %v262
    %v1056 = vunpack.c.h.b16 %v262
    %v1057 = vunpack.c.l.b16 %v263
    %v1058 = vunpack.c.h.b16 %v263
    %v1059 = vunpack.c.l.b16 %v264
    %v1060 = vunpack.c.h.b16 %v264
    %v1061 = vunpack.c.l.b16 %v265
    %v1062 = vunpack.c.h.b16 %v265
    %v1063 = vunpack.c.l.b16 %v266
    %v1064 = vunpack.c.h.b16 %v266
    %v1065 = vunpack.c.l.b16 %v267
    %v1066 = vunpack.c.h.b16 %v267
    %v1067 = vunpack.c.l.b16 %v268
    %v1068 = vunpack.c.h.b16 %v268
    %v1069 = vunpack.c.l.b16 %v269
    %v1070 = vunpack.c.h.b16 %v269
    %v1071 = vunpack.c.l.b16 %v270
    %v1072 = vunpack.c.h.b16 %v270
    %v1073 = vunpack.c.l.b16 %v271
    %v1074 = vunpack.c.h.b16 %v271
    %v1075 = vunpack.c.l.b16 %v272
    %v1076 = vunpack.c.h.b16 %v272
    %v1077 = vunpack.c.l.b16 %v273
    %v1078 = vunpack.c.h.b16 %v273
    %v1079 = vunpack.c.l.b16 %v274
    %v1080 = vunpack.c.h.b16 %v274
    %v1081 = vunpack.c.l.b16 %v275
    %v1082 = vunpack.c.h.b16 %v275
    %v1083 = vunpack.c.l.b16 %v276
    %v1084 = vunpack.c.h.b16 %v276
    %v1085 = vunpack.c.l.b16 %v277
    %v1086 = vunpack.c.h.b16 %v277
    %v1087 = vunpack.c.l.b16 %v278
    %v1088 = vunpack.c.h.b16 %v278
    %v1089 = vunpack.c.l.b16 %v279
    %v1090 = vunpack.c.h.b16 %v279
    %v1091 = vunpack.c.l.b16 %v280
    %v1092 = vunpack.c.h.b16 %v280
    %v1093 = vunpack.c.l.b16 %v281
    %v1094 = vunpack.c.h.b16 %v281
    %v1095 = vunpack.c.l.b16 %v282
    %v1096 = vunpack.c.h.b16 %v282
    %v1097 = vunpack.c.l.b16 %v283
    %v1098 = vunpack.c.h.b16 %v283
    %v1099 = vunpack.c.l.b16 %v284
    %v1100 = vunpack.c.h.b16 %v284
    %v1101 = vunpack.c.l.b16 %v285
    %v1102 = vunpack.c.h.b16 %v285
    %v1103 = vunpack.c.l.b16 %v286
    %v1104 = vunpack.c.h.b16 %v286
    %v1105 = vunpack.c.l.b16 %v287
    %v1106 = vunpack.c.h.b16 %v287
    %v1107 = vunpack.c.l.b16 %v288
    %v1108 = vunpack.c.h.b16 %v288
    %v1109 = vunpack.c.l.b16 %v289
    %v1110 = vunpack.c.h.b16 %v289
    %v1111 = vunpack.c.l.b16 %v290
    %v1112 = vunpack.c.h.b16 %v290
    %v1113 = vunpack.c.l.b16 %v291
    %v1114 = vunpack.c.h.b16 %v291
    %v1115 = vunpack.c.l.b16 %v292
    %v1116 = vunpack.c.h.b16 %v292
    %v1117 = vunpack.c.l.b16 %v293
    %v1118 = vunpack.c.h.b16 %v293
    %v1119 = vunpack.c.l.b16 %v294
    %v1120 = vunpack.c.h.b16 %v294
    %v1121 = vunpack.c.l.b16 %v295
    %v1122 = vunpack.c.h.b16 %v295
    %v1123 = vunpack.c.l.b16 %v296
    %v1124 = vunpack.c.h.b16 %v296
    %v1125 = vunpack.c.l.b16 %v297
    %v1126 = vunpack.c.h.b16 %v297
    %v1127 = vunpack.c.l.b16 %v298
    %v1128 = vunpack.c.h.b16 %v298
    %v1129 = vunpack.c.l.b16 %v299
    %v1130 = vunpack.c.h.b16 %v299
    %v1131 = vunpack.c.l.b16 %v300
    %v1132 = vunpack.c.h.b16 %v300
    %v1133 = vunpack.c.l.b16 %v301
    %v1134 = vunpack.c.h.b16 %v301
    %v1135 = vunpack.c.l.b16 %v302
    %v1136 = vunpack.c.h.b16 %v302
    %v1137 = vunpack.c.l.b16 %v303
    %v1138 = vunpack.c.h.b16 %v303
    %v1139 = vunpack.c.l.b16 %v304
    %v1140 = vunpack.c.h.b16 %v304
    %v1141 = vunpack.c.l.b16 %v305
    %v1142 = vunpack.c.h.b16 %v305
    %v1143 = vunpack.c.l.b16 %v306
    %v1144 = vunpack.c.h.b16 %v306
    %v1145 = vunpack.c.l.b16 %v307
    %v1146 = vunpack.c.h.b16 %v307
    %v1147 = vunpack.c.l.b16 %v308
    %v1148 = vunpack.c.h.b16 %v308
    %v1149 = vunpack.c.l.b16 %v309
    %v1150 = vunpack.c.h.b16 %v309
    %v1151 = vunpack.c.l.b16 %v310
    %v1152 = vunpack.c.h.b16 %v310
    %v1153 = vunpack.c.l.b16 %v311
    %v1154 = vunpack.c.h.b16 %v311
    %v1155 = vunpack.c.l.b16 %v312
    %v1156 = vunpack.c.h.b16 %v312
    %v1157 = vunpack.c.l.b16 %v313
    %v1158 = vunpack.c.h.b16 %v313
    %v1159 = vunpack.c.l.b16 %v314
    %v1160 = vunpack.c.h.b16 %v314
    %v1161 = vunpack.c.l.b16 %v315
    %v1162 = vunpack.c.h.b16 %v315
    %v1163 = vunpack.c.l.b16 %v316
    %v1164 = vunpack.c.h.b16 %v316
    %v1165 = vunpack.c.l.b16 %v317
    %v1166 = vunpack.c.h.b16 %v317
    %v1167 = vunpack.c.l.b16 %v318
    %v1168 = vunpack.c.h.b16 %v318
    %v1169 = vunpack.c.l.b16 %v319
    %v1170 = vunpack.c.h.b16 %v319
    %v1171 = vunpack.c.l.b16 %v320
    %v1172 = vunpack.c.h.b16 %v320
    %v1173 = vunpack.c.l.b16 %v321
    %v1174 = vunpack.c.h.b16 %v321
    %v1175 = vunpack.c.l.b16 %v322
    %v1176 = vunpack.c.h.b16 %v322
    %v1177 = vunpack.c.l.b16 %v323
    %v1178 = vunpack.c.h.b16 %v323
    %v1179 = vunpack.c.l.b16 %v324
    %v1180 = vunpack.c.h.b16 %v324
    %v1181 = vunpack.c.l.b16 %v325
    %v1182 = vunpack.c.h.b16 %v325
    %v1183 = vunpack.c.l.b16 %v326
    %v1184 = vunpack.c.h.b16 %v326
    %v1185 = vunpack.c.l.b16 %v327
    %v1186 = vunpack.c.h.b16 %v327
    %v1187 = vunpack.c.l.b16 %v328
    %v1188 = vunpack.c.h.b16 %v328
    %v1189 = vunpack.c.l.b16 %v329
    %v1190 = vunpack.c.h.b16 %v329
    %v1191 = vunpack.c.l.b16 %v330
    %v1192 = vunpack.c.h.b16 %v330
    %v1193 = vunpack.c.l.b16 %v331
    %v1194 = vunpack.c.h.b16 %v331
    %v1195 = vunpack.c.l.b16 %v332
    %v1196 = vunpack.c.h.b16 %v332
    %v1197 = vunpack.c.l.b16 %v333
    %v1198 = vunpack.c.h.b16 %v333
    %v1199 = vunpack.c.l.b16 %v334
    %v1200 = vunpack.c.h.b16 %v334
    %v1201 = vunpack.c.l.b16 %v335
    %v1202 = vunpack.c.h.b16 %v335
    %v1203 = vunpack.c.l.b16 %v336
    %v1204 = vunpack.c.h.b16 %v336
    %v1205 = vunpack.c.l.b16 %v337
    %v1206 = vunpack.c.h.b16 %v337
    %v1207 = vunpack.c.l.b16 %v338
    %v1208 = vunpack.c.h.b16 %v338
    %v1209 = vunpack.c.l.b16 %v339
    %v1210 = vunpack.c.h.b16 %v339
    %v1211 = vunpack.c.l.b16 %v340
    %v1212 = vunpack.c.h.b16 %v340
    %v1213 = vunpack.c.l.b16 %v341
    %v1214 = vunpack.c.h.b16 %v341
    %v1215 = vunpack.c.l.b16 %v342
    %v1216 = vunpack.c.h.b16 %v342
    %v1217 = vunpack.c.l.b16 %v343
    %v1218 = vunpack.c.h.b16 %v343
    %v1219 = vunpack.c.l.b16 %v344
    %v1220 = vunpack.c.h.b16 %v344
    %v1221 = vunpack.c.l.b16 %v345
    %v1222 = vunpack.c.h.b16 %v345
    %v1223 = vunpack.c.l.b16 %v346
    %v1224 = vunpack.c.h.b16 %v346
    %v1225 = vunpack.c.l.b16 %v347
    %v1226 = vunpack.c.h.b16 %v347
    %v1227 = vunpack.c.l.b16 %v348
    %v1228 = vunpack.c.h.b16 %v348
    %v1229 = vunpack.c.l.b16 %v349
    %v1230 = vunpack.c.h.b16 %v349
    %v1231 = vunpack.c.l.b16 %v350
    %v1232 = vunpack.c.h.b16 %v350
    %v1233 = vunpack.c.l.b16 %v351
    %v1234 = vunpack.c.h.b16 %v351
    %v1235 = vunpack.c.l.b16 %v352
    %v1236 = vunpack.c.h.b16 %v352
    %v1237 = vunpack.c.l.b16 %v353
    %v1238 = vunpack.c.h.b16 %v353
    %v1239 = vunpack.c.l.b16 %v354
    %v1240 = vunpack.c.h.b16 %v354
    %v1241 = vunpack.c.l.b16 %v355
    %v1242 = vunpack.c.h.b16 %v355
    %v1243 = vunpack.c.l.b16 %v356
    %v1244 = vunpack.c.h.b16 %v356
    %v1245 = vunpack.c.l.b16 %v357
    %v1246 = vunpack.c.h.b16 %v357
    %v1247 = vunpack.c.l.b16 %v358
    %v1248 = vunpack.c.h.b16 %v358
    %v1249 = vunpack.c.l.b16 %v359
    %v1250 = vunpack.c.h.b16 %v359
    %v1251 = vunpack.c.l.b16 %v360
    %v1252 = vunpack.c.h.b16 %v360
    %v1253 = vunpack.c.l.b16 %v361
    %v1254 = vunpack.c.h.b16 %v361
    %v1255 = vunpack.c.l.b16 %v362
    %v1256 = vunpack.c.h.b16 %v362
    %v1257 = vunpack.c.l.b16 %v363
    %v1258 = vunpack.c.h.b16 %v363
    %v1259 = vunpack.c.l.b16 %v364
    %v1260 = vunpack.c.h.b16 %v364
    %v1261 = vunpack.c.l.b16 %v365
    %v1262 = vunpack.c.h.b16 %v365
    %v1263 = vunpack.c.l.b16 %v366
    %v1264 = vunpack.c.h.b16 %v366
    %v1265 = vunpack.c.l.b16 %v367
    %v1266 = vunpack.c.h.b16 %v367
    %v1267 = vunpack.c.l.b16 %v368
    %v1268 = vunpack.c.h.b16 %v368
    %v1269 = vunpack.c.l.b16 %v369
    %v1270 = vunpack.c.h.b16 %v369
    %v1271 = vunpack.c.l.b16 %v370
    %v1272 = vunpack.c.h.b16 %v370
    %v1273 = vunpack.c.l.b16 %v371
    %v1274 = vunpack.c.h.b16 %v371
    %v1275 = vunpack.c.l.b16 %v372
    %v1276 = vunpack.c.h.b16 %v372
    %v1277 = vunpack.c.l.b16 %v373
    %v1278 = vunpack.c.h.b16 %v373
    %v1279 = vunpack.c.l.b16 %v374
    %v1280 = vunpack.c.h.b16 %v374
    %v1281 = vunpack.c.l.b16 %v375
    %v1282 = vunpack.c.h.b16 %v375
    %v1283 = vunpack.c.l.b16 %v376
    %v1284 = vunpack.c.h.b16 %v376
    %v1285 = vunpack.c.l.b16 %v377
    %v1286 = vunpack.c.h.b16 %v377
    %v1287 = vunpack.c.l.b16 %v378
    %v1288 = vunpack.c.h.b16 %v378
    %v1289 = vunpack.c.l.b16 %v379
    %v1290 = vunpack.c.h.b16 %v379
    %v1291 = vunpack.c.l.b16 %v380
    %v1292 = vunpack.c.h.b16 %v380
    %v1293 = vunpack.c.l.b16 %v381
    %v1294 = vunpack.c.h.b16 %v381
    %v1295 = vunpack.c.l.b16 %v382
    %v1296 = vunpack.c.h.b16 %v382
    %v1297 = vunpack.c.l.b16 %v383
    %v1298 = vunpack.c.h.b16 %v383
    %v1299 = vunpack.c.l.b16 %v384
    %v1300 = vunpack.c.h.b16 %v384
    %v1301 = vunpack.c.l.b16 %v385
    %v1302 = vunpack.c.h.b16 %v385
    %v1303 = vunpack.c.l.b16 %v386
    %v1304 = vunpack.c.h.b16 %v386
    %v1305 = vunpack.c.l.b16 %v387
    %v1306 = vunpack.c.h.b16 %v387
    %v1307 = vunpack.c.l.b16 %v388
    %v1308 = vunpack.c.h.b16 %v388
    %v1309 = vunpack.c.l.b16 %v389
    %v1310 = vunpack.c.h.b16 %v389
    %v1311 = vunpack.c.l.b16 %v390
    %v1312 = vunpack.c.h.b16 %v390
    %v1313 = vunpack.c.l.b16 %v391
    %v1314 = vunpack.c.h.b16 %v391
    %v1315 = vunpack.c.l.b16 %v392
    %v1316 = vunpack.c.h.b16 %v392
    %v1317 = vunpack.c.l.b16 %v393
    %v1318 = vunpack.c.h.b16 %v393
    %v1319 = vunpack.c.l.b16 %v394
    %v1320 = vunpack.c.h.b16 %v394
    %v1321 = vunpack.c.l.b16 %v395
    %v1322 = vunpack.c.h.b16 %v395
    %v1323 = vunpack.c.l.b16 %v396
    %v1324 = vunpack.c.h.b16 %v396
    %v1325 = vunpack.c.l.b16 %v397
    %v1326 = vunpack.c.h.b16 %v397
    %v1327 = vunpack.c.l.b16 %v398
    %v1328 = vunpack.c.h.b16 %v398
    %v1329 = vunpack.c.l.b16 %v399
    %v1330 = vunpack.c.h.b16 %v399
    %v1331 = vunpack.c.l.b16 %v400
    %v1332 = vunpack.c.h.b16 %v400
    %v1333 = vpack.c.b16 %v761, %v757
    %v1334 = vpack.c.b16 %v762, %v758
    %v1335 = vpack.c.b16 %v763, %v759
    %v1336 = vpack.c.b16 %v764, %v760
    %v1337 = vpack.c.b16 %v769, %v765
    %v1338 = vpack.c.b16 %v770, %v766
    %v1339 = vpack.c.b16 %v771, %v767
    %v1340 = vpack.c.b16 %v772, %v768
    %v1341 = vpack.c.b16 %v777, %v773
    %v1342 = vpack.c.b16 %v778, %v774
    %v1343 = vpack.c.b16 %v779, %v775
    %v1344 = vpack.c.b16 %v780, %v776
    %v1345 = vpack.c.b16 %v785, %v781
    %v1346 = vpack.c.b16 %v786, %v782
    %v1347 = vpack.c.b16 %v787, %v783
    %v1348 = vpack.c.b16 %v788, %v784
    %v1349 = vpack.c.b16 %v793, %v789
    %v1350 = vpack.c.b16 %v794, %v790
    %v1351 = vpack.c.b16 %v795, %v791
    %v1352 = vpack.c.b16 %v796, %v792
    %v1353 = vpack.c.b16 %v801, %v797
    %v1354 = vpack.c.b16 %v802, %v798
    %v1355 = vpack.c.b16 %v803, %v799
    %v1356 = vpack.c.b16 %v804, %v800
    %v1357 = vpack.c.b16 %v809, %v805
    %v1358 = vpack.c.b16 %v810, %v806
    %v1359 = vpack.c.b16 %v811, %v807
    %v1360 = vpack.c.b16 %v812, %v808
    %v1361 = vpack.c.b16 %v817, %v813
    %v1362 = vpack.c.b16 %v818, %v814
    %v1363 = vpack.c.b16 %v819, %v815
    %v1364 = vpack.c.b16 %v820, %v816
    %v1365 = vpack.c.b16 %v825, %v821
    %v1366 = vpack.c.b16 %v826, %v822
    %v1367 = vpack.c.b16 %v827, %v823
    %v1368 = vpack.c.b16 %v828, %v824
    %v1369 = vpack.c.b16 %v833, %v829
    %v1370 = vpack.c.b16 %v834, %v830
    %v1371 = vpack.c.b16 %v835, %v831
    %v1372 = vpack.c.b16 %v836, %v832
    %v1373 = vpack.c.b16 %v841, %v837
    %v1374 = vpack.c.b16 %v842, %v838
    %v1375 = vpack.c.b16 %v843, %v839
    %v1376 = vpack.c.b16 %v844, %v840
    %v1377 = vpack.c.b16 %v849, %v845
    %v1378 = vpack.c.b16 %v850, %v846
    %v1379 = vpack.c.b16 %v851, %v847
    %v1380 = vpack.c.b16 %v852, %v848
    %v1381 = vpack.c.b16 %v857, %v853
    %v1382 = vpack.c.b16 %v858, %v854
    %v1383 = vpack.c.b16 %v859, %v855
    %v1384 = vpack.c.b16 %v860, %v856
    %v1385 = vpack.c.b16 %v865, %v861
    %v1386 = vpack.c.b16 %v866, %v862
    %v1387 = vpack.c.b16 %v867, %v863
    %v1388 = vpack.c.b16 %v868, %v864
    %v1389 = vpack.c.b16 %v873, %v869
    %v1390 = vpack.c.b16 %v874, %v870
    %v1391 = vpack.c.b16 %v875, %v871
    %v1392 = vpack.c.b16 %v876, %v872
    %v1393 = vpack.c.b16 %v881, %v877
    %v1394 = vpack.c.b16 %v882, %v878
    %v1395 = vpack.c.b16 %v883, %v879
    %v1396 = vpack.c.b16 %v884, %v880
    %v1397 = vpack.c.b16 %v889, %v885
    %v1398 = vpack.c.b16 %v890, %v886
    %v1399 = vpack.c.b16 %v891, %v887
    %v1400 = vpack.c.b16 %v892, %v888
    %v1401 = vpack.c.b16 %v897, %v893
    %v1402 = vpack.c.b16 %v898, %v894
    %v1403 = vpack.c.b16 %v899, %v895
    %v1404 = vpack.c.b16 %v900, %v896
    %v1405 = vpack.c.b16 %v905, %v901
    %v1406 = vpack.c.b16 %v906, %v902
    %v1407 = vpack.c.b16 %v907, %v903
    %v1408 = vpack.c.b16 %v908, %v904
    %v1409 = vpack.c.b16 %v913, %v909
    %v1410 = vpack.c.b16 %v914, %v910
    %v1411 = vpack.c.b16 %v915, %v911
    %v1412 = vpack.c.b16 %v916, %v912
    %v1413 = vpack.c.b16 %v921, %v917
    %v1414 = vpack.c.b16 %v922, %v918
    %v1415 = vpack.c.b16 %v923, %v919
    %v1416 = vpack.c.b16 %v924, %v920
    %v1417 = vpack.c.b16 %v929, %v925
    %v1418 = vpack.c.b16 %v930, %v926
    %v1419 = vpack.c.b16 %v931, %v927
    %v1420 = vpack.c.b16 %v932, %v928
    %v1421 = vpack.c.b16 %v937, %v933
    %v1422 = vpack.c.b16 %v938, %v934
    %v1423 = vpack.c.b16 %v939, %v935
    %v1424 = vpack.c.b16 %v940, %v936
    %v1425 = vpack.c.b16 %v945, %v941
    %v1426 = vpack.c.b16 %v946, %v942
    %v1427 = vpack.c.b16 %v947, %v943
    %v1428 = vpack.c.b16 %v948, %v944
    %v1429 = vpack.c.b16 %v953, %v949
    %v1430 = vpack.c.b16 %v954, %v950
    %v1431 = vpack.c.b16 %v955, %v951
    %v1432 = vpack.c.b16 %v956, %v952
    %v1433 = vpack.c.b16 %v961, %v957
    %v1434 = vpack.c.b16 %v962, %v958
    %v1435 = vpack.c.b16 %v963, %v959
    %v1436 = vpack.c.b16 %v964, %v960
    %v1437 = vpack.c.b16 %v969, %v965
    %v1438 = vpack.c.b16 %v970, %v966
    %v1439 = vpack.c.b16 %v971, %v967
    %v1440 = vpack.c.b16 %v972, %v968
    %v1441 = vpack.c.b16 %v977, %v973
    %v1442 = vpack.c.b16 %v978, %v974
    %v1443 = vpack.c.b16 %v979, %v975
    %v1444 = vpack.c.b16 %v980, %v976
    %v1445 = vpack.c.b16 %v985, %v981
    %v1446 = vpack.c.b16 %v986, %v982
    %v1447 = vpack.c.b16 %v987, %v983
    %v1448 = vpack.c.b16 %v988, %v984
    %v1449 = vpack.c.b16 %v993, %v989
    %v1450 = vpack.c.b16 %v994, %v990
    %v1451 = vpack.c.b16 %v995, %v991
    %v1452 = vpack.c.b16 %v996, %v992
    %v1453 = vpack.c.b16 %v1001, %v997
    %v1454 = vpack.c.b16 %v1002, %v998
    %v1455 = vpack.c.b16 %v1003, %v999
    %v1456 = vpack.c.b16 %v1004, %v1000
    %v1457 = vpack.c.b16 %v1009, %v1005
    %v1458 = vpack.c.b16 %v1010, %v1006
    %v1459 = vpack.c.b16 %v1011, %v1007
    %v1460 = vpack.c.b16 %v1012, %v1008
    %v1461 = vpack.c.b16 %v1017, %v1013
    %v1462 = vpack.c.b16 %v1018, %v1014
    %v1463 = vpack.c.b16 %v1019, %v1015
    %v1464 = vpack.c.b16 %v1020, %v1016
    %v1465 = vpack.c.b16 %v1025, %v1021
    %v1466 = vpack.c.b16 %v1026, %v1022
    %v1467 = vpack.c.b16 %v1027, %v1023
    %v1468 = vpack.c.b16 %v1028, %v1024
    %v1469 = vpack.c.b16 %v1033, %v1029
    %v1470 = vpack.c.b16 %v1034, %v1030
    %v1471 = vpack.c.b16 %v1035, %v1031
    %v1472 = vpack.c.b16 %v1036, %v1032
    %v1473 = vpack.c.b16 %v1041, %v1037
    %v1474 = vpack.c.b16 %v1042, %v1038
    %v1475 = vpack.c.b16 %v1043, %v1039
    %v1476 = vpack.c.b16 %v1044, %v1040
    %v1477 = vpack.c.b16 %v1049, %v1045
    %v1478 = vpack.c.b16 %v1050, %v1046
    %v1479 = vpack.c.b16 %v1051, %v1047
    %v1480 = vpack.c.b16 %v1052, %v1048
    %v1481 = vpack.c.b16 %v1057, %v1053
    %v1482 = vpack.c.b16 %v1058, %v1054
    %v1483 = vpack.c.b16 %v1059, %v1055
    %v1484 = vpack.c.b16 %v1060, %v1056
    %v1485 = vpack.c.b16 %v1065, %v1061
    %v1486 = vpack.c.b16 %v1066, %v1062
    %v1487 = vpack.c.b16 %v1067, %v1063
    %v1488 = vpack.c.b16 %v1068, %v1064
    %v1489 = vpack.c.b16 %v1073, %v1069
    %v1490 = vpack.c.b16 %v1074, %v1070
    %v1491 = vpack.c.b16 %v1075, %v1071
    %v1492 = vpack.c.b16 %v1076, %v1072
    %v1493 = vpack.c.b16 %v1081, %v1077
    %v1494 = vpack.c.b16 %v1082, %v1078
    %v1495 = vpack.c.b16 %v1083, %v1079
    %v1496 = vpack.c.b16 %v1084, %v1080
    %v1497 = vpack.c.b16 %v1089, %v1085
    %v1498 = vpack.c.b16 %v1090, %v1086
    %v1499 = vpack.c.b16 %v1091, %v1087
    %v1500 = vpack.c.b16 %v1092, %v1088
    %v1501 = vpack.c.b16 %v1097, %v1093
    %v1502 = vpack.c.b16 %v1098, %v1094
    %v1503 = vpack.c.b16 %v1099, %v1095
    %v1504 = vpack.c.b16 %v1100, %v1096
    %v1505 = vpack.c.b16 %v1105, %v1101
    %v1506 = vpack.c.b16 %v1106, %v1102
    %v1507 = vpack.c.b16 %v1107, %v1103
    %v1508 = vpack.c.b16 %v1108, %v1104
    %v1509 = vpack.c.b16 %v1113, %v1109
    %v1510 = vpack.c.b16 %v1114, %v1110
    %v1511 = vpack.c.b16 %v1115, %v1111
    %v1512 = vpack.c.b16 %v1116, %v1112
    %v1513 = vpack.c.b16 %v1121, %v1117
    %v1514 = vpack.c.b16 %v1122, %v1118
    %v1515 = vpack.c.b16 %v1123, %v1119
    %v1516 = vpack.c.b16 %v1124, %v1120
    %v1517 = vpack.c.b16 %v1129, %v1125
    %v1518 = vpack.c.b16 %v1130, %v1126
    %v1519 = vpack.c.b16 %v1131, %v1127
    %v1520 = vpack.c.b16 %v1132, %v1128
    %v1521 = vpack.c.b16 %v1137, %v1133
    %v1522 = vpack.c.b16 %v1138, %v1134
    %v1523 = vpack.c.b16 %v1139, %v1135
    %v1524 = vpack.c.b16 %v1140, %v1136
    %v1525 = vpack.c.b16 %v1145, %v1141
    %v1526 = vpack.c.b16 %v1146, %v1142
    %v1527 = vpack.c.b16 %v1147, %v1143
    %v1528 = vpack.c.b16 %v1148, %v1144
    %v1529 = vpack.c.b16 %v1153, %v1149
    %v1530 = vpack.c.b16 %v1154, %v1150
    %v1531 = vpack.c.b16 %v1155, %v1151
    %v1532 = vpack.c.b16 %v1156, %v1152
    %v1533 = vpack.c.b16 %v1161, %v1157
    %v1534 = vpack.c.b16 %v1162, %v1158
    %v1535 = vpack.c.b16 %v1163, %v1159
    %v1536 = vpack.c.b16 %v1164, %v1160
    %v1537 = vpack.c.b16 %v1169, %v1165
    %v1538 = vpack.c.b16 %v1170, %v1166
    %v1539 = vpack.c.b16 %v1171, %v1167
    %v1540 = vpack.c.b16 %v1172, %v1168
    %v1541 = vpack.c.b16 %v1177, %v1173
    %v1542 = vpack.c.b16 %v1178, %v1174
    %v1543 = vpack.c.b16 %v1179, %v1175
    %v1544 = vpack.c.b16 %v1180, %v1176
    %v1545 = vpack.c.b16 %v1185, %v1181
    %v1546 = vpack.c.b16 %v1186, %v1182
    %v1547 = vpack.c.b16 %v1187, %v1183
    %v1548 = vpack.c.b16 %v1188, %v1184
    %v1549 = vpack.c.b16 %v1193, %v1189
    %v1550 = vpack.c.b16 %v1194, %v1190
    %v1551 = vpack.c.b16 %v1195, %v1191
    %v1552 = vpack.c.b16 %v1196, %v1192
    %v1553 = vpack.c.b16 %v1201, %v1197
    %v1554 = vpack.c.b16 %v1202, %v1198
    %v1555 = vpack.c.b16 %v1203, %v1199
    %v1556 = vpack.c.b16 %v1204, %v1200
    %v1557 = vpack.c.b16 %v1209, %v1205
    %v1558 = vpack.c.b16 %v1210, %v1206
    %v1559 = vpack.c.b16 %v1211, %v1207
    %v1560 = vpack.c.b16 %v1212, %v1208
    %v1561 = vpack.c.b16 %v1217, %v1213
    %v1562 = vpack.c.b16 %v1218, %v1214
    %v1563 = vpack.c.b16 %v1219, %v1215
    %v1564 = vpack.c.b16 %v1220, %v1216
    %v1565 = vpack.c.b16 %v1225, %v1221
    %v1566 = vpack.c.b16 %v1226, %v1222
    %v1567 = vpack.c.b16 %v1227, %v1223
    %v1568 = vpack.c.b16 %v1228, %v1224
    %v1569 = vpack.c.b16 %v1233, %v1229
    %v1570 = vpack.c.b16 %v1234, %v1230
    %v1571 = vpack.c.b16 %v1235, %v1231
    %v1572 = vpack.c.b16 %v1236, %v1232
    %v1573 = vpack.c.b16 %v1241, %v1237
    %v1574 = vpack.c.b16 %v1242, %v1238
    %v1575 = vpack.c.b16 %v1243, %v1239
    %v1576 = vpack.c.b16 %v1244, %v1240
    %v1577 = vpack.c.b16 %v1249, %v1245
    %v1578 = vpack.c.b16 %v1250, %v1246
    %v1579 = vpack.c.b16 %v1251, %v1247
    %v1580 = vpack.c.b16 %v1252, %v1248
    %v1581 = vpack.c.b16 %v1257, %v1253
    %v1582 = vpack.c.b16 %v1258, %v1254
    %v1583 = vpack.c.b16 %v1259, %v1255
    %v1584 = vpack.c.b16 %v1260, %v1256
    %v1585 = vpack.c.b16 %v1265, %v1261
    %v1586 = vpack.c.b16 %v1266, %v1262
    %v1587 = vpack.c.b16 %v1267, %v1263
    %v1588 = vpack.c.b16 %v1268, %v1264
    %v1589 = vpack.c.b16 %v1273, %v1269
    %v1590 = vpack.c.b16 %v1274, %v1270
    %v1591 = vpack.c.b16 %v1275, %v1271
    %v1592 = vpack.c.b16 %v1276, %v1272
    %v1593 = vpack.c.b16 %v1281, %v1277
    %v1594 = vpack.c.b16 %v1282, %v1278
    %v1595 = vpack.c.b16 %v1283, %v1279
    %v1596 = vpack.c.b16 %v1284, %v1280
    %v1597 = vpack.c.b16 %v1289, %v1285
    %v1598 = vpack.c.b16 %v1290, %v1286
    %v1599 = vpack.c.b16 %v1291, %v1287
    %v1600 = vpack.c.b16 %v1292, %v1288
    %v1601 = vpack.c.b16 %v1297, %v1293
    %v1602 = vpack.c.b16 %v1298, %v1294
    %v1603 = vpack.c.b16 %v1299, %v1295
    %v1604 = vpack.c.b16 %v1300, %v1296
    %v1605 = vpack.c.b16 %v1305, %v1301
    %v1606 = vpack.c.b16 %v1306, %v1302
    %v1607 = vpack.c.b16 %v1307, %v1303
    %v1608 = vpack.c.b16 %v1308, %v1304
    %v1609 = vpack.c.b16 %v1313, %v1309
    %v1610 = vpack.c.b16 %v1314, %v1310
    %v1611 = vpack.c.b16 %v1315, %v1311
    %v1612 = vpack.c.b16 %v1316, %v1312
    %v1613 = vpack.c.b16 %v1321, %v1317
    %v1614 = vpack.c.b16 %v1322, %v1318
    %v1615 = vpack.c.b16 %v1323, %v1319
    %v1616 = vpack.c.b16 %v1324, %v1320
    %v1617 = vpack.c.b16 %v1329, %v1325
    %v1618 = vpack.c.b16 %v1330, %v1326
    %v1619 = vpack.c.b16 %v1331, %v1327
    %v1620 = vpack.c.b16 %v1332, %v1328
    %1909 = vmatprep.subr.bf16.mxu0 %v1362
    %1910 = vmatpush1.bf16.msra.mxu0 %v1361
    %1911 = vmatprep.subr.bf16.mxu0 %v1358
    %1912 = vmatpush1.bf16.msra.mxu0 %v1357
    %1913 = vmatprep.subr.bf16.mxu0 %v1354
    %1914 = vmatpush1.bf16.msra.mxu0 %v1353
    %1915 = vmatprep.subr.bf16.mxu0 %v1350
    %1916 = vmatpush1.bf16.msra.mxu0 %v1349
    %1917 = vmatprep.subr.bf16.mxu0 %v1346
    %1918 = vmatpush1.bf16.msra.mxu0 %v1345
    %1919 = vmatprep.subr.bf16.mxu0 %v1342
    %1920 = vmatpush1.bf16.msra.mxu0 %v1341
    %1921 = vmatprep.subr.bf16.mxu0 %v1338
    %1922 = vmatpush1.bf16.msra.mxu0 %v1337
    %1923 = vmatprep.subr.bf16.mxu0 %v1334
    %1924 = vmatpush1.bf16.msra.mxu0 %v1333
    %1925 = vmatprep.subr.bf16.mxu0 %v1394
    %1926 = vmatpush2.bf16.msra.mxu0 %v1393
    %1927 = vmatprep.subr.bf16.mxu0 %v1390
    %1928 = vmatpush2.bf16.msra.mxu0 %v1389
    %1929 = vmatprep.subr.bf16.mxu0 %v1386
    %1930 = vmatpush2.bf16.msra.mxu0 %v1385
    %1931 = vmatprep.subr.bf16.mxu0 %v1382
    %1932 = vmatpush2.bf16.msra.mxu0 %v1381
    %1933 = vmatprep.subr.bf16.mxu0 %v1378
    %1934 = vmatpush2.bf16.msra.mxu0 %v1377
    %1935 = vmatprep.subr.bf16.mxu0 %v1374
    %1936 = vmatpush2.bf16.msra.mxu0 %v1373
    %1937 = vmatprep.subr.bf16.mxu0 %v1370
    %1938 = vmatpush2.bf16.msra.mxu0 %v1369
    %1939 = vmatprep.subr.bf16.mxu0 %v1366
    %1940 = vmatpush2.bf16.msra.mxu0 %v1365
    %1941 = vmatprep.mubr.bf16.mxu0 %v452
    %1942 = vmatmul.mubr.bf16.gmra.mxu0 %v451
    %v1943 = vpop.f32.mrf.mxu0
    %v1944 = vadd.f32 %v406, %v1943
    %v1945 = vpop.f32.mrf.mxu0
    %v1946 = vadd.f32 %v410, %v1945
    %v1947 = vpop.f32.mrf.mxu0
    %v1948 = vadd.f32 %v406, %v1947
    %v1949 = vpop.f32.mrf.mxu0
    %v1950 = vadd.f32 %v410, %v1949
    %1951 = vdwg.mxu0
    %1952 = vmatprep.subr.bf16.mxu0 %v1426
    %1953 = vmatpush1.bf16.msra.mxu0 %v1425
    %1954 = vmatprep.subr.bf16.mxu0 %v1422
    %1955 = vmatpush1.bf16.msra.mxu0 %v1421
    %1956 = vmatprep.subr.bf16.mxu0 %v1418
    %1957 = vmatpush1.bf16.msra.mxu0 %v1417
    %1958 = vmatprep.subr.bf16.mxu0 %v1414
    %1959 = vmatpush1.bf16.msra.mxu0 %v1413
    %1960 = vmatprep.subr.bf16.mxu0 %v1410
    %1961 = vmatpush1.bf16.msra.mxu0 %v1409
    %1962 = vmatprep.subr.bf16.mxu0 %v1406
    %1963 = vmatpush1.bf16.msra.mxu0 %v1405
    %1964 = vmatprep.subr.bf16.mxu0 %v1402
    %1965 = vmatpush1.bf16.msra.mxu0 %v1401
    %1966 = vmatprep.subr.bf16.mxu0 %v1398
    %1967 = vmatpush1.bf16.msra.mxu0 %v1397
    %1968 = vmatprep.subr.bf16.mxu0 %v1458
    %1969 = vmatpush2.bf16.msra.mxu0 %v1457
    %1970 = vmatprep.subr.bf16.mxu0 %v1454
    %1971 = vmatpush2.bf16.msra.mxu0 %v1453
    %1972 = vmatprep.subr.bf16.mxu0 %v1450
    %1973 = vmatpush2.bf16.msra.mxu0 %v1449
    %1974 = vmatprep.subr.bf16.mxu0 %v1446
    %1975 = vmatpush2.bf16.msra.mxu0 %v1445
    %1976 = vmatprep.subr.bf16.mxu0 %v1442
    %1977 = vmatpush2.bf16.msra.mxu0 %v1441
    %1978 = vmatprep.subr.bf16.mxu0 %v1438
    %1979 = vmatpush2.bf16.msra.mxu0 %v1437
    %1980 = vmatprep.subr.bf16.mxu0 %v1434
    %1981 = vmatpush2.bf16.msra.mxu0 %v1433
    %1982 = vmatprep.subr.bf16.mxu0 %v1430
    %1983 = vmatpush2.bf16.msra.mxu0 %v1429
    %1984 = vmatprep.mubr.bf16.mxu0 %v454
    %1985 = vmatmul.mubr.bf16.gmra.mxu0 %v453
    %v1986 = vpop.f32.mrf.mxu0
    %v1987 = vadd.f32 %v1944, %v1986
    %v1988 = vpop.f32.mrf.mxu0
    %v1989 = vadd.f32 %v1946, %v1988
    %v1990 = vpop.f32.mrf.mxu0
    %v1991 = vadd.f32 %v1948, %v1990
    %v1992 = vpop.f32.mrf.mxu0
    %v1993 = vadd.f32 %v1950, %v1992
    %1994 = vdwg.mxu0
    %1995 = vmatprep.subr.bf16.mxu0 %v1490
    %1996 = vmatpush1.bf16.msra.mxu0 %v1489
    %1997 = vmatprep.subr.bf16.mxu0 %v1486
    %1998 = vmatpush1.bf16.msra.mxu0 %v1485
    %1999 = vmatprep.subr.bf16.mxu0 %v1482
    %2000 = vmatpush1.bf16.msra.mxu0 %v1481
    %2001 = vmatprep.subr.bf16.mxu0 %v1478
    %2002 = vmatpush1.bf16.msra.mxu0 %v1477
    %2003 = vmatprep.subr.bf16.mxu0 %v1474
    %2004 = vmatpush1.bf16.msra.mxu0 %v1473
    %2005 = vmatprep.subr.bf16.mxu0 %v1470
    %2006 = vmatpush1.bf16.msra.mxu0 %v1469
    %2007 = vmatprep.subr.bf16.mxu0 %v1466
    %2008 = vmatpush1.bf16.msra.mxu0 %v1465
    %2009 = vmatprep.subr.bf16.mxu0 %v1462
    %2010 = vmatpush1.bf16.msra.mxu0 %v1461
    %2011 = vmatprep.subr.bf16.mxu0 %v1522
    %2012 = vmatpush2.bf16.msra.mxu0 %v1521
    %2013 = vmatprep.subr.bf16.mxu0 %v1518
    %2014 = vmatpush2.bf16.msra.mxu0 %v1517
    %2015 = vmatprep.subr.bf16.mxu0 %v1514
    %2016 = vmatpush2.bf16.msra.mxu0 %v1513
    %2017 = vmatprep.subr.bf16.mxu0 %v1510
    %2018 = vmatpush2.bf16.msra.mxu0 %v1509
    %2019 = vmatprep.subr.bf16.mxu0 %v1506
    %2020 = vmatpush2.bf16.msra.mxu0 %v1505
    %2021 = vmatprep.subr.bf16.mxu0 %v1502
    %2022 = vmatpush2.bf16.msra.mxu0 %v1501
    %2023 = vmatprep.subr.bf16.mxu0 %v1498
    %2024 = vmatpush2.bf16.msra.mxu0 %v1497
    %2025 = vmatprep.subr.bf16.mxu0 %v1494
    %2026 = vmatpush2.bf16.msra.mxu0 %v1493
    %2027 = vmatprep.mubr.bf16.mxu0 %v456
    %2028 = vmatmul.mubr.bf16.gmra.mxu0 %v455
    %v2029 = vpop.f32.mrf.mxu0
    %v2030 = vadd.f32 %v1987, %v2029
    %v2031 = vpop.f32.mrf.mxu0
    %v2032 = vadd.f32 %v1989, %v2031
    %v2033 = vpop.f32.mrf.mxu0
    %v2034 = vadd.f32 %v1991, %v2033
    %v2035 = vpop.f32.mrf.mxu0
    %v2036 = vadd.f32 %v1993, %v2035
    %2037 = vdwg.mxu0
    %2038 = vmatprep.subr.bf16.mxu0 %v1554
    %2039 = vmatpush1.bf16.msra.mxu0 %v1553
    %2040 = vmatprep.subr.bf16.mxu0 %v1550
    %2041 = vmatpush1.bf16.msra.mxu0 %v1549
    %2042 = vmatprep.subr.bf16.mxu0 %v1546
    %2043 = vmatpush1.bf16.msra.mxu0 %v1545
    %2044 = vmatprep.subr.bf16.mxu0 %v1542
    %2045 = vmatpush1.bf16.msra.mxu0 %v1541
    %2046 = vmatprep.subr.bf16.mxu0 %v1538
    %2047 = vmatpush1.bf16.msra.mxu0 %v1537
    %2048 = vmatprep.subr.bf16.mxu0 %v1534
    %2049 = vmatpush1.bf16.msra.mxu0 %v1533
    %2050 = vmatprep.subr.bf16.mxu0 %v1530
    %2051 = vmatpush1.bf16.msra.mxu0 %v1529
    %2052 = vmatprep.subr.bf16.mxu0 %v1526
    %2053 = vmatpush1.bf16.msra.mxu0 %v1525
    %2054 = vmatprep.subr.bf16.mxu0 %v1586
    %2055 = vmatpush2.bf16.msra.mxu0 %v1585
    %2056 = vmatprep.subr.bf16.mxu0 %v1582
    %2057 = vmatpush2.bf16.msra.mxu0 %v1581
    %2058 = vmatprep.subr.bf16.mxu0 %v1578
    %2059 = vmatpush2.bf16.msra.mxu0 %v1577
    %2060 = vmatprep.subr.bf16.mxu0 %v1574
    %2061 = vmatpush2.bf16.msra.mxu0 %v1573
    %2062 = vmatprep.subr.bf16.mxu0 %v1570
    %2063 = vmatpush2.bf16.msra.mxu0 %v1569
    %2064 = vmatprep.subr.bf16.mxu0 %v1566
    %2065 = vmatpush2.bf16.msra.mxu0 %v1565
    %2066 = vmatprep.subr.bf16.mxu0 %v1562
    %2067 = vmatpush2.bf16.msra.mxu0 %v1561
    %2068 = vmatprep.subr.bf16.mxu0 %v1558
    %2069 = vmatpush2.bf16.msra.mxu0 %v1557
    %2070 = vmatprep.mubr.bf16.mxu0 %v458
    %2071 = vmatmul.mubr.bf16.gmra.mxu0 %v457
    %v2072 = vpop.f32.mrf.mxu0
    %v2073 = vadd.f32 %v2030, %v2072
    %v2074 = vpop.f32.mrf.mxu0
    %v2075 = vadd.f32 %v2032, %v2074
    %v2076 = vpop.f32.mrf.mxu0
    %v2077 = vadd.f32 %v2034, %v2076
    %v2078 = vpop.f32.mrf.mxu0
    %v2079 = vadd.f32 %v2036, %v2078
    %2080 = vdwg.mxu0
    %2081 = vmatprep.subr.bf16.mxu0 %v1618
    %2082 = vmatpush1.bf16.msra.mxu0 %v1617
    %2083 = vmatprep.subr.bf16.mxu0 %v1614
    %2084 = vmatpush1.bf16.msra.mxu0 %v1613
    %2085 = vmatprep.subr.bf16.mxu0 %v1610
    %2086 = vmatpush1.bf16.msra.mxu0 %v1609
    %2087 = vmatprep.subr.bf16.mxu0 %v1606
    %2088 = vmatpush1.bf16.msra.mxu0 %v1605
    %2089 = vmatprep.subr.bf16.mxu0 %v1602
    %2090 = vmatpush1.bf16.msra.mxu0 %v1601
    %2091 = vmatprep.subr.bf16.mxu0 %v1598
    %2092 = vmatpush1.bf16.msra.mxu0 %v1597
    %2093 = vmatprep.subr.bf16.mxu0 %v1594
    %2094 = vmatpush1.bf16.msra.mxu0 %v1593
    %2095 = vmatprep.subr.bf16.mxu0 %v1590
    %2096 = vmatpush1.bf16.msra.mxu0 %v1589
    %2097 = vmatprep.subr.bf16.mxu0 0
    %2098 = vmatpush2.bf16.msra.mxu0 0
    %2099 = vmatprep.subr.bf16.mxu0 0
    %2100 = vmatpush2.bf16.msra.mxu0 0
    %2101 = vmatprep.subr.bf16.mxu0 0
    %2102 = vmatpush2.bf16.msra.mxu0 0
    %2103 = vmatprep.subr.bf16.mxu0 0
    %2104 = vmatpush2.bf16.msra.mxu0 0
    %2105 = vmatprep.subr.bf16.mxu0 0
    %2106 = vmatpush2.bf16.msra.mxu0 0
    %2107 = vmatprep.subr.bf16.mxu0 0
    %2108 = vmatpush2.bf16.msra.mxu0 0
    %2109 = vmatprep.subr.bf16.mxu0 0
    %2110 = vmatpush2.bf16.msra.mxu0 0
    %2111 = vmatprep.subr.bf16.mxu0 0
    %2112 = vmatpush2.bf16.msra.mxu0 0
    %2113 = vmatprep.mubr.bf16.mxu0 0
    %2114 = vmatmul.mubr.bf16.gmra.mxu0 %v459
    %v2115 = vpop.f32.mrf.mxu0
    %v2116 = vadd.f32 %v2073, %v2115
    %v2117 = vpop.f32.mrf.mxu0
    %v2118 = vadd.f32 %v2075, %v2117
    %v2119 = vpop.f32.mrf.mxu0
    %v2120 = vadd.f32 %v2077, %v2119
    %v2121 = vpop.f32.mrf.mxu0
    %v2122 = vadd.f32 %v2079, %v2121
    %2123 = vdwg.mxu0
    %2124 = vmatprep.subr.bf16.mxu0 %v1364
    %2125 = vmatpush1.bf16.msra.mxu0 %v1363
    %2126 = vmatprep.subr.bf16.mxu0 %v1360
    %2127 = vmatpush1.bf16.msra.mxu0 %v1359
    %2128 = vmatprep.subr.bf16.mxu0 %v1356
    %2129 = vmatpush1.bf16.msra.mxu0 %v1355
    %2130 = vmatprep.subr.bf16.mxu0 %v1352
    %2131 = vmatpush1.bf16.msra.mxu0 %v1351
    %2132 = vmatprep.subr.bf16.mxu0 %v1348
    %2133 = vmatpush1.bf16.msra.mxu0 %v1347
    %2134 = vmatprep.subr.bf16.mxu0 %v1344
    %2135 = vmatpush1.bf16.msra.mxu0 %v1343
    %2136 = vmatprep.subr.bf16.mxu0 %v1340
    %2137 = vmatpush1.bf16.msra.mxu0 %v1339
    %2138 = vmatprep.subr.bf16.mxu0 %v1336
    %2139 = vmatpush1.bf16.msra.mxu0 %v1335
    %2140 = vmatprep.subr.bf16.mxu0 %v1396
    %2141 = vmatpush2.bf16.msra.mxu0 %v1395
    %2142 = vmatprep.subr.bf16.mxu0 %v1392
    %2143 = vmatpush2.bf16.msra.mxu0 %v1391
    %2144 = vmatprep.subr.bf16.mxu0 %v1388
    %2145 = vmatpush2.bf16.msra.mxu0 %v1387
    %2146 = vmatprep.subr.bf16.mxu0 %v1384
    %2147 = vmatpush2.bf16.msra.mxu0 %v1383
    %2148 = vmatprep.subr.bf16.mxu0 %v1380
    %2149 = vmatpush2.bf16.msra.mxu0 %v1379
    %2150 = vmatprep.subr.bf16.mxu0 %v1376
    %2151 = vmatpush2.bf16.msra.mxu0 %v1375
    %2152 = vmatprep.subr.bf16.mxu0 %v1372
    %2153 = vmatpush2.bf16.msra.mxu0 %v1371
    %2154 = vmatprep.subr.bf16.mxu0 %v1368
    %2155 = vmatpush2.bf16.msra.mxu0 %v1367
    %2156 = vmatprep.mubr.bf16.mxu0 %v452
    %2157 = vmatmul.mubr.bf16.gmra.mxu0 %v451
    %v2158 = vpop.f32.mrf.mxu0
    %v2159 = vadd.f32 %v414, %v2158
    %v2160 = vpop.f32.mrf.mxu0
    %v2161 = vadd.f32 %v418, %v2160
    %v2162 = vpop.f32.mrf.mxu0
    %v2163 = vadd.f32 %v414, %v2162
    %v2164 = vpop.f32.mrf.mxu0
    %v2165 = vadd.f32 %v418, %v2164
    %2166 = vdwg.mxu0
    %2167 = vmatprep.subr.bf16.mxu0 %v1428
    %2168 = vmatpush1.bf16.msra.mxu0 %v1427
    %2169 = vmatprep.subr.bf16.mxu0 %v1424
    %2170 = vmatpush1.bf16.msra.mxu0 %v1423
    %2171 = vmatprep.subr.bf16.mxu0 %v1420
    %2172 = vmatpush1.bf16.msra.mxu0 %v1419
    %2173 = vmatprep.subr.bf16.mxu0 %v1416
    %2174 = vmatpush1.bf16.msra.mxu0 %v1415
    %2175 = vmatprep.subr.bf16.mxu0 %v1412
    %2176 = vmatpush1.bf16.msra.mxu0 %v1411
    %2177 = vmatprep.subr.bf16.mxu0 %v1408
    %2178 = vmatpush1.bf16.msra.mxu0 %v1407
    %2179 = vmatprep.subr.bf16.mxu0 %v1404
    %2180 = vmatpush1.bf16.msra.mxu0 %v1403
    %2181 = vmatprep.subr.bf16.mxu0 %v1400
    %2182 = vmatpush1.bf16.msra.mxu0 %v1399
    %2183 = vmatprep.subr.bf16.mxu0 %v1460
    %2184 = vmatpush2.bf16.msra.mxu0 %v1459
    %2185 = vmatprep.subr.bf16.mxu0 %v1456
    %2186 = vmatpush2.bf16.msra.mxu0 %v1455
    %2187 = vmatprep.subr.bf16.mxu0 %v1452
    %2188 = vmatpush2.bf16.msra.mxu0 %v1451
    %2189 = vmatprep.subr.bf16.mxu0 %v1448
    %2190 = vmatpush2.bf16.msra.mxu0 %v1447
    %2191 = vmatprep.subr.bf16.mxu0 %v1444
    %2192 = vmatpush2.bf16.msra.mxu0 %v1443
    %2193 = vmatprep.subr.bf16.mxu0 %v1440
    %2194 = vmatpush2.bf16.msra.mxu0 %v1439
    %2195 = vmatprep.subr.bf16.mxu0 %v1436
    %2196 = vmatpush2.bf16.msra.mxu0 %v1435
    %2197 = vmatprep.subr.bf16.mxu0 %v1432
    %2198 = vmatpush2.bf16.msra.mxu0 %v1431
    %2199 = vmatprep.mubr.bf16.mxu0 %v454
    %2200 = vmatmul.mubr.bf16.gmra.mxu0 %v453
    %v2201 = vpop.f32.mrf.mxu0
    %v2202 = vadd.f32 %v2159, %v2201
    %v2203 = vpop.f32.mrf.mxu0
    %v2204 = vadd.f32 %v2161, %v2203
    %v2205 = vpop.f32.mrf.mxu0
    %v2206 = vadd.f32 %v2163, %v2205
    %v2207 = vpop.f32.mrf.mxu0
    %v2208 = vadd.f32 %v2165, %v2207
    %2209 = vdwg.mxu0
    %2210 = vmatprep.subr.bf16.mxu0 %v1492
    %2211 = vmatpush1.bf16.msra.mxu0 %v1491
    %2212 = vmatprep.subr.bf16.mxu0 %v1488
    %2213 = vmatpush1.bf16.msra.mxu0 %v1487
    %2214 = vmatprep.subr.bf16.mxu0 %v1484
    %2215 = vmatpush1.bf16.msra.mxu0 %v1483
    %2216 = vmatprep.subr.bf16.mxu0 %v1480
    %2217 = vmatpush1.bf16.msra.mxu0 %v1479
    %2218 = vmatprep.subr.bf16.mxu0 %v1476
    %2219 = vmatpush1.bf16.msra.mxu0 %v1475
    %2220 = vmatprep.subr.bf16.mxu0 %v1472
    %2221 = vmatpush1.bf16.msra.mxu0 %v1471
    %2222 = vmatprep.subr.bf16.mxu0 %v1468
    %2223 = vmatpush1.bf16.msra.mxu0 %v1467
    %2224 = vmatprep.subr.bf16.mxu0 %v1464
    %2225 = vmatpush1.bf16.msra.mxu0 %v1463
    %2226 = vmatprep.subr.bf16.mxu0 %v1524
    %2227 = vmatpush2.bf16.msra.mxu0 %v1523
    %2228 = vmatprep.subr.bf16.mxu0 %v1520
    %2229 = vmatpush2.bf16.msra.mxu0 %v1519
    %2230 = vmatprep.subr.bf16.mxu0 %v1516
    %2231 = vmatpush2.bf16.msra.mxu0 %v1515
    %2232 = vmatprep.subr.bf16.mxu0 %v1512
    %2233 = vmatpush2.bf16.msra.mxu0 %v1511
    %2234 = vmatprep.subr.bf16.mxu0 %v1508
    %2235 = vmatpush2.bf16.msra.mxu0 %v1507
    %2236 = vmatprep.subr.bf16.mxu0 %v1504
    %2237 = vmatpush2.bf16.msra.mxu0 %v1503
    %2238 = vmatprep.subr.bf16.mxu0 %v1500
    %2239 = vmatpush2.bf16.msra.mxu0 %v1499
    %2240 = vmatprep.subr.bf16.mxu0 %v1496
    %2241 = vmatpush2.bf16.msra.mxu0 %v1495
    %2242 = vmatprep.mubr.bf16.mxu0 %v456
    %2243 = vmatmul.mubr.bf16.gmra.mxu0 %v455
    %v2244 = vpop.f32.mrf.mxu0
    %v2245 = vadd.f32 %v2202, %v2244
    %v2246 = vpop.f32.mrf.mxu0
    %v2247 = vadd.f32 %v2204, %v2246
    %v2248 = vpop.f32.mrf.mxu0
    %v2249 = vadd.f32 %v2206, %v2248
    %v2250 = vpop.f32.mrf.mxu0
    %v2251 = vadd.f32 %v2208, %v2250
    %2252 = vdwg.mxu0
    %2253 = vmatprep.subr.bf16.mxu0 %v1556
    %2254 = vmatpush1.bf16.msra.mxu0 %v1555
    %2255 = vmatprep.subr.bf16.mxu0 %v1552
    %2256 = vmatpush1.bf16.msra.mxu0 %v1551
    %2257 = vmatprep.subr.bf16.mxu0 %v1548
    %2258 = vmatpush1.bf16.msra.mxu0 %v1547
    %2259 = vmatprep.subr.bf16.mxu0 %v1544
    %2260 = vmatpush1.bf16.msra.mxu0 %v1543
    %2261 = vmatprep.subr.bf16.mxu0 %v1540
    %2262 = vmatpush1.bf16.msra.mxu0 %v1539
    %2263 = vmatprep.subr.bf16.mxu0 %v1536
    %2264 = vmatpush1.bf16.msra.mxu0 %v1535
    %2265 = vmatprep.subr.bf16.mxu0 %v1532
    %2266 = vmatpush1.bf16.msra.mxu0 %v1531
    %2267 = vmatprep.subr.bf16.mxu0 %v1528
    %2268 = vmatpush1.bf16.msra.mxu0 %v1527
    %2269 = vmatprep.subr.bf16.mxu0 %v1588
    %2270 = vmatpush2.bf16.msra.mxu0 %v1587
    %2271 = vmatprep.subr.bf16.mxu0 %v1584
    %2272 = vmatpush2.bf16.msra.mxu0 %v1583
    %2273 = vmatprep.subr.bf16.mxu0 %v1580
    %2274 = vmatpush2.bf16.msra.mxu0 %v1579
    %2275 = vmatprep.subr.bf16.mxu0 %v1576
    %2276 = vmatpush2.bf16.msra.mxu0 %v1575
    %2277 = vmatprep.subr.bf16.mxu0 %v1572
    %2278 = vmatpush2.bf16.msra.mxu0 %v1571
    %2279 = vmatprep.subr.bf16.mxu0 %v1568
    %2280 = vmatpush2.bf16.msra.mxu0 %v1567
    %2281 = vmatprep.subr.bf16.mxu0 %v1564
    %2282 = vmatpush2.bf16.msra.mxu0 %v1563
    %2283 = vmatprep.subr.bf16.mxu0 %v1560
    %2284 = vmatpush2.bf16.msra.mxu0 %v1559
    %2285 = vmatprep.mubr.bf16.mxu0 %v458
    %2286 = vmatmul.mubr.bf16.gmra.mxu0 %v457
    %v2287 = vpop.f32.mrf.mxu0
    %v2288 = vadd.f32 %v2245, %v2287
    %v2289 = vpop.f32.mrf.mxu0
    %v2290 = vadd.f32 %v2247, %v2289
    %v2291 = vpop.f32.mrf.mxu0
    %v2292 = vadd.f32 %v2249, %v2291
    %v2293 = vpop.f32.mrf.mxu0
    %v2294 = vadd.f32 %v2251, %v2293
    %2295 = vdwg.mxu0
    %2296 = vmatprep.subr.bf16.mxu0 %v1620
    %2297 = vmatpush1.bf16.msra.mxu0 %v1619
    %2298 = vmatprep.subr.bf16.mxu0 %v1616
    %2299 = vmatpush1.bf16.msra.mxu0 %v1615
    %2300 = vmatprep.subr.bf16.mxu0 %v1612
    %2301 = vmatpush1.bf16.msra.mxu0 %v1611
    %2302 = vmatprep.subr.bf16.mxu0 %v1608
    %2303 = vmatpush1.bf16.msra.mxu0 %v1607
    %2304 = vmatprep.subr.bf16.mxu0 %v1604
    %2305 = vmatpush1.bf16.msra.mxu0 %v1603
    %2306 = vmatprep.subr.bf16.mxu0 %v1600
    %2307 = vmatpush1.bf16.msra.mxu0 %v1599
    %2308 = vmatprep.subr.bf16.mxu0 %v1596
    %2309 = vmatpush1.bf16.msra.mxu0 %v1595
    %2310 = vmatprep.subr.bf16.mxu0 %v1592
    %2311 = vmatpush1.bf16.msra.mxu0 %v1591
    %2312 = vmatprep.subr.bf16.mxu0 0
    %2313 = vmatpush2.bf16.msra.mxu0 0
    %2314 = vmatprep.subr.bf16.mxu0 0
    %2315 = vmatpush2.bf16.msra.mxu0 0
    %2316 = vmatprep.subr.bf16.mxu0 0
    %2317 = vmatpush2.bf16.msra.mxu0 0
    %2318 = vmatprep.subr.bf16.mxu0 0
    %2319 = vmatpush2.bf16.msra.mxu0 0
    %2320 = vmatprep.subr.bf16.mxu0 0
    %2321 = vmatpush2.bf16.msra.mxu0 0
    %2322 = vmatprep.subr.bf16.mxu0 0
    %2323 = vmatpush2.bf16.msra.mxu0 0
    %2324 = vmatprep.subr.bf16.mxu0 0
    %2325 = vmatpush2.bf16.msra.mxu0 0
    %2326 = vmatprep.subr.bf16.mxu0 0
    %2327 = vmatpush2.bf16.msra.mxu0 0
    %2328 = vmatprep.mubr.bf16.mxu0 0
    %2329 = vmatmul.mubr.bf16.gmra.mxu0 %v459
    %v2330 = vpop.f32.mrf.mxu0
    %v2331 = vadd.f32 %v2288, %v2330
    %v2332 = vpop.f32.mrf.mxu0
    %v2333 = vadd.f32 %v2290, %v2332
    %v2334 = vpop.f32.mrf.mxu0
    %v2335 = vadd.f32 %v2292, %v2334
    %v2336 = vpop.f32.mrf.mxu0
    %v2337 = vadd.f32 %v2294, %v2336
    %2338 = vdwg.mxu0
    %v2339 = vmax.f32 %v2116, 0.0
    %v2340 = vmax.f32 %v2118, 0.0
    %v2341 = vmax.f32 %v2331, 0.0
    %v2342 = vmax.f32 %v2333, 0.0
    %v2343 = vmax.f32 %v2120, 0.0
    %v2344 = vmax.f32 %v2122, 0.0
    %v2345 = vmax.f32 %v2335, 0.0
    %v2346 = vmax.f32 %v2337, 0.0
    %v2347 = vpack.c.bf16 %v2343, %v2339
    %v2348 = vpack.c.bf16 %v2344, %v2340
    %v2349 = vpack.c.bf16 %v2345, %v2341
    %v2350 = vpack.c.bf16 %v2346, %v2342
    %v2351 = vld [vmem:[#allocation6] sm:$0xff]
    %v2352 = vld [vmem:[#allocation6 + $0x8] sm:$0xff]
    %v2353 = vld [vmem:[#allocation6 + $0x10] sm:$0xff]
    %v2354 = vld [vmem:[#allocation6 + $0x18] sm:$0xff]
    %v2355 = vld [vmem:[#allocation6 + $0x20] sm:$0xff]
    %v2356 = vld [vmem:[#allocation6 + $0x28] sm:$0xff]
    %v2357 = vld [vmem:[#allocation6 + $0x30] sm:$0xff]
    %v2358 = vld [vmem:[#allocation6 + $0x38] sm:$0xff]
    %v2359 = vld [vmem:[#allocation6 + $0x40] sm:$0xff]
    %v2360 = vld [vmem:[#allocation6 + $0x48] sm:$0xff]
    %v2361 = vld [vmem:[#allocation6 + $0x50] sm:$0xff]
    %v2362 = vld [vmem:[#allocation6 + $0x58] sm:$0xff]
    %v2363 = vld [vmem:[#allocation6 + $0x60] sm:$0xff]
    %v2364 = vld [vmem:[#allocation6 + $0x68] sm:$0xff]
    %v2365 = vld [vmem:[#allocation6 + $0x70] sm:$0xff]
    %v2366 = vld [vmem:[#allocation6 + $0x78] sm:$0xff]
    %v2367 = vld [vmem:[#allocation6 + $0x80] sm:$0xff]
    %v2368 = vld [vmem:[#allocation6 + $0x88] sm:$0xff]
    %v2369 = vld [vmem:[#allocation6 + $0x90] sm:$0xff]
    %v2370 = vld [vmem:[#allocation6 + $0x98] sm:$0xff]
    %v2371 = vld [vmem:[#allocation6 + $0xa0] sm:$0xff]
    %v2372 = vld [vmem:[#allocation6 + $0xa8] sm:$0xff]
    %v2373 = vld [vmem:[#allocation6 + $0xb0] sm:$0xff]
    %v2374 = vld [vmem:[#allocation6 + $0xb8] sm:$0xff]
    %v2375 = vld [vmem:[#allocation6 + $0xc0] sm:$0xff]
    %v2376 = vld [vmem:[#allocation6 + $0xc8] sm:$0xff]
    %v2377 = vld [vmem:[#allocation6 + $0xd0] sm:$0xff]
    %v2378 = vld [vmem:[#allocation6 + $0xd8] sm:$0xff]
    %v2379 = vld [vmem:[#allocation6 + $0xe0] sm:$0xff]
    %v2380 = vld [vmem:[#allocation6 + $0xe8] sm:$0xff]
    %v2381 = vld [vmem:[#allocation6 + $0xf0] sm:$0xff]
    %v2382 = vld [vmem:[#allocation6 + $0xf8] sm:$0xff]
    %v2383 = vld [vmem:[#allocation6 + $0x100] sm:$0xff]
    %v2384 = vld [vmem:[#allocation6 + $0x108] sm:$0xff]
    %v2385 = vld [vmem:[#allocation6 + $0x110] sm:$0xff]
    %v2386 = vld [vmem:[#allocation6 + $0x118] sm:$0xff]
    %v2387 = vld [vmem:[#allocation6 + $0x120] sm:$0xff]
    %v2388 = vld [vmem:[#allocation6 + $0x128] sm:$0xff]
    %v2389 = vld [vmem:[#allocation6 + $0x130] sm:$0xff]
    %v2390 = vld [vmem:[#allocation6 + $0x138] sm:$0xff]
    %v2391 = vld [vmem:[#allocation6 + $0x140] sm:$0xff]
    %v2392 = vld [vmem:[#allocation6 + $0x148] sm:$0xff]
    %v2393 = vld [vmem:[#allocation6 + $0x150] sm:$0xff]
    %v2394 = vld [vmem:[#allocation6 + $0x158] sm:$0xff]
    %v2395 = vld [vmem:[#allocation6 + $0x160] sm:$0xff]
    %v2396 = vld [vmem:[#allocation6 + $0x168] sm:$0xff]
    %v2397 = vld [vmem:[#allocation6 + $0x170] sm:$0xff]
    %v2398 = vld [vmem:[#allocation6 + $0x178] sm:$0xff]
    %v2399 = vld [vmem:[#allocation6 + $0x180] sm:$0xff]
    %v2400 = vld [vmem:[#allocation6 + $0x188] sm:$0xff]
    %v2401 = vld [vmem:[#allocation6 + $0x190] sm:$0xff]
    %v2402 = vld [vmem:[#allocation6 + $0x198] sm:$0xff]
    %v2403 = vld [vmem:[#allocation6 + $0x1a0] sm:$0xff]
    %v2404 = vld [vmem:[#allocation6 + $0x1a8] sm:$0xff]
    %v2405 = vld [vmem:[#allocation6 + $0x1b0] sm:$0xff]
    %v2406 = vld [vmem:[#allocation6 + $0x1b8] sm:$0xff]
    %v2407 = vld [vmem:[#allocation6 + $0x1c0] sm:$0xff]
    %v2408 = vld [vmem:[#allocation6 + $0x1c8] sm:$0xff]
    %v2409 = vld [vmem:[#allocation6 + $0x1d0] sm:$0xff]
    %v2410 = vld [vmem:[#allocation6 + $0x1d8] sm:$0xff]
    %v2411 = vld [vmem:[#allocation6 + $0x1e0] sm:$0xff]
    %v2412 = vld [vmem:[#allocation6 + $0x1e8] sm:$0xff]
    %v2413 = vld [vmem:[#allocation6 + $0x1f0] sm:$0xff]
    %v2414 = vld [vmem:[#allocation6 + $0x1f8] sm:$0xff]
    %v2415 = vld [vmem:[#allocation7] sm:$0x3]
    %v2417 = vlaneseq
    %v2418 = vshrl.u32 %v2417, 7
    %v2419 = vsub.s32 0, %v2418
    %v2420 = vrot.slane %v2415, %v2419
    %v2421 = vlaneseq
    %v2422 = vshrl.u32 %v2421, 7
    %v2423 = vsub.s32 1, %v2422
    %v2424 = vrot.slane %v2415, %v2423
    %v2491 = vunpack.c.l.b16 %v2351
    %v2492 = vunpack.c.h.b16 %v2351
    %v2493 = vunpack.c.l.b16 %v2352
    %v2494 = vunpack.c.h.b16 %v2352
    %v2495 = vunpack.c.l.b16 %v2353
    %v2496 = vunpack.c.h.b16 %v2353
    %v2497 = vunpack.c.l.b16 %v2354
    %v2498 = vunpack.c.h.b16 %v2354
    %v2499 = vunpack.c.l.b16 %v2355
    %v2500 = vunpack.c.h.b16 %v2355
    %v2501 = vunpack.c.l.b16 %v2356
    %v2502 = vunpack.c.h.b16 %v2356
    %v2503 = vunpack.c.l.b16 %v2357
    %v2504 = vunpack.c.h.b16 %v2357
    %v2505 = vunpack.c.l.b16 %v2358
    %v2506 = vunpack.c.h.b16 %v2358
    %v2507 = vunpack.c.l.b16 %v2359
    %v2508 = vunpack.c.h.b16 %v2359
    %v2509 = vunpack.c.l.b16 %v2360
    %v2510 = vunpack.c.h.b16 %v2360
    %v2511 = vunpack.c.l.b16 %v2361
    %v2512 = vunpack.c.h.b16 %v2361
    %v2513 = vunpack.c.l.b16 %v2362
    %v2514 = vunpack.c.h.b16 %v2362
    %v2515 = vunpack.c.l.b16 %v2363
    %v2516 = vunpack.c.h.b16 %v2363
    %v2517 = vunpack.c.l.b16 %v2364
    %v2518 = vunpack.c.h.b16 %v2364
    %v2519 = vunpack.c.l.b16 %v2365
    %v2520 = vunpack.c.h.b16 %v2365
    %v2521 = vunpack.c.l.b16 %v2366
    %v2522 = vunpack.c.h.b16 %v2366
    %v2523 = vunpack.c.l.b16 %v2367
    %v2524 = vunpack.c.h.b16 %v2367
    %v2525 = vunpack.c.l.b16 %v2368
    %v2526 = vunpack.c.h.b16 %v2368
    %v2527 = vunpack.c.l.b16 %v2369
    %v2528 = vunpack.c.h.b16 %v2369
    %v2529 = vunpack.c.l.b16 %v2370
    %v2530 = vunpack.c.h.b16 %v2370
    %v2531 = vunpack.c.l.b16 %v2371
    %v2532 = vunpack.c.h.b16 %v2371
    %v2533 = vunpack.c.l.b16 %v2372
    %v2534 = vunpack.c.h.b16 %v2372
    %v2535 = vunpack.c.l.b16 %v2373
    %v2536 = vunpack.c.h.b16 %v2373
    %v2537 = vunpack.c.l.b16 %v2374
    %v2538 = vunpack.c.h.b16 %v2374
    %v2539 = vunpack.c.l.b16 %v2375
    %v2540 = vunpack.c.h.b16 %v2375
    %v2541 = vunpack.c.l.b16 %v2376
    %v2542 = vunpack.c.h.b16 %v2376
    %v2543 = vunpack.c.l.b16 %v2377
    %v2544 = vunpack.c.h.b16 %v2377
    %v2545 = vunpack.c.l.b16 %v2378
    %v2546 = vunpack.c.h.b16 %v2378
    %v2547 = vunpack.c.l.b16 %v2379
    %v2548 = vunpack.c.h.b16 %v2379
    %v2549 = vunpack.c.l.b16 %v2380
    %v2550 = vunpack.c.h.b16 %v2380
    %v2551 = vunpack.c.l.b16 %v2381
    %v2552 = vunpack.c.h.b16 %v2381
    %v2553 = vunpack.c.l.b16 %v2382
    %v2554 = vunpack.c.h.b16 %v2382
    %v2555 = vunpack.c.l.b16 %v2383
    %v2556 = vunpack.c.h.b16 %v2383
    %v2557 = vunpack.c.l.b16 %v2384
    %v2558 = vunpack.c.h.b16 %v2384
    %v2559 = vunpack.c.l.b16 %v2385
    %v2560 = vunpack.c.h.b16 %v2385
    %v2561 = vunpack.c.l.b16 %v2386
    %v2562 = vunpack.c.h.b16 %v2386
    %v2563 = vunpack.c.l.b16 %v2387
    %v2564 = vunpack.c.h.b16 %v2387
    %v2565 = vunpack.c.l.b16 %v2388
    %v2566 = vunpack.c.h.b16 %v2388
    %v2567 = vunpack.c.l.b16 %v2389
    %v2568 = vunpack.c.h.b16 %v2389
    %v2569 = vunpack.c.l.b16 %v2390
    %v2570 = vunpack.c.h.b16 %v2390
    %v2571 = vunpack.c.l.b16 %v2391
    %v2572 = vunpack.c.h.b16 %v2391
    %v2573 = vunpack.c.l.b16 %v2392
    %v2574 = vunpack.c.h.b16 %v2392
    %v2575 = vunpack.c.l.b16 %v2393
    %v2576 = vunpack.c.h.b16 %v2393
    %v2577 = vunpack.c.l.b16 %v2394
    %v2578 = vunpack.c.h.b16 %v2394
    %v2579 = vunpack.c.l.b16 %v2395
    %v2580 = vunpack.c.h.b16 %v2395
    %v2581 = vunpack.c.l.b16 %v2396
    %v2582 = vunpack.c.h.b16 %v2396
    %v2583 = vunpack.c.l.b16 %v2397
    %v2584 = vunpack.c.h.b16 %v2397
    %v2585 = vunpack.c.l.b16 %v2398
    %v2586 = vunpack.c.h.b16 %v2398
    %v2587 = vunpack.c.l.b16 %v2399
    %v2588 = vunpack.c.h.b16 %v2399
    %v2589 = vunpack.c.l.b16 %v2400
    %v2590 = vunpack.c.h.b16 %v2400
    %v2591 = vunpack.c.l.b16 %v2401
    %v2592 = vunpack.c.h.b16 %v2401
    %v2593 = vunpack.c.l.b16 %v2402
    %v2594 = vunpack.c.h.b16 %v2402
    %v2595 = vunpack.c.l.b16 %v2403
    %v2596 = vunpack.c.h.b16 %v2403
    %v2597 = vunpack.c.l.b16 %v2404
    %v2598 = vunpack.c.h.b16 %v2404
    %v2599 = vunpack.c.l.b16 %v2405
    %v2600 = vunpack.c.h.b16 %v2405
    %v2601 = vunpack.c.l.b16 %v2406
    %v2602 = vunpack.c.h.b16 %v2406
    %v2603 = vunpack.c.l.b16 %v2407
    %v2604 = vunpack.c.h.b16 %v2407
    %v2605 = vunpack.c.l.b16 %v2408
    %v2606 = vunpack.c.h.b16 %v2408
    %v2607 = vunpack.c.l.b16 %v2409
    %v2608 = vunpack.c.h.b16 %v2409
    %v2609 = vunpack.c.l.b16 %v2410
    %v2610 = vunpack.c.h.b16 %v2410
    %v2611 = vunpack.c.l.b16 %v2411
    %v2612 = vunpack.c.h.b16 %v2411
    %v2613 = vunpack.c.l.b16 %v2412
    %v2614 = vunpack.c.h.b16 %v2412
    %v2615 = vunpack.c.l.b16 %v2413
    %v2616 = vunpack.c.h.b16 %v2413
    %v2617 = vunpack.c.l.b16 %v2414
    %v2618 = vunpack.c.h.b16 %v2414
    %v2619 = vpack.c.b16 %v2493, %v2491
    %v2620 = vpack.c.b16 %v2494, %v2492
    %v2621 = vpack.c.b16 %v2497, %v2495
    %v2622 = vpack.c.b16 %v2498, %v2496
    %v2623 = vpack.c.b16 %v2501, %v2499
    %v2624 = vpack.c.b16 %v2502, %v2500
    %v2625 = vpack.c.b16 %v2505, %v2503
    %v2626 = vpack.c.b16 %v2506, %v2504
    %v2627 = vpack.c.b16 %v2509, %v2507
    %v2628 = vpack.c.b16 %v2510, %v2508
    %v2629 = vpack.c.b16 %v2513, %v2511
    %v2630 = vpack.c.b16 %v2514, %v2512
    %v2631 = vpack.c.b16 %v2517, %v2515
    %v2632 = vpack.c.b16 %v2518, %v2516
    %v2633 = vpack.c.b16 %v2521, %v2519
    %v2634 = vpack.c.b16 %v2522, %v2520
    %v2635 = vpack.c.b16 %v2525, %v2523
    %v2636 = vpack.c.b16 %v2526, %v2524
    %v2637 = vpack.c.b16 %v2529, %v2527
    %v2638 = vpack.c.b16 %v2530, %v2528
    %v2639 = vpack.c.b16 %v2533, %v2531
    %v2640 = vpack.c.b16 %v2534, %v2532
    %v2641 = vpack.c.b16 %v2537, %v2535
    %v2642 = vpack.c.b16 %v2538, %v2536
    %v2643 = vpack.c.b16 %v2541, %v2539
    %v2644 = vpack.c.b16 %v2542, %v2540
    %v2645 = vpack.c.b16 %v2545, %v2543
    %v2646 = vpack.c.b16 %v2546, %v2544
    %v2647 = vpack.c.b16 %v2549, %v2547
    %v2648 = vpack.c.b16 %v2550, %v2548
    %v2649 = vpack.c.b16 %v2553, %v2551
    %v2650 = vpack.c.b16 %v2554, %v2552
    %v2651 = vpack.c.b16 %v2557, %v2555
    %v2652 = vpack.c.b16 %v2558, %v2556
    %v2653 = vpack.c.b16 %v2561, %v2559
    %v2654 = vpack.c.b16 %v2562, %v2560
    %v2655 = vpack.c.b16 %v2565, %v2563
    %v2656 = vpack.c.b16 %v2566, %v2564
    %v2657 = vpack.c.b16 %v2569, %v2567
    %v2658 = vpack.c.b16 %v2570, %v2568
    %v2659 = vpack.c.b16 %v2573, %v2571
    %v2660 = vpack.c.b16 %v2574, %v2572
    %v2661 = vpack.c.b16 %v2577, %v2575
    %v2662 = vpack.c.b16 %v2578, %v2576
    %v2663 = vpack.c.b16 %v2581, %v2579
    %v2664 = vpack.c.b16 %v2582, %v2580
    %v2665 = vpack.c.b16 %v2585, %v2583
    %v2666 = vpack.c.b16 %v2586, %v2584
    %v2667 = vpack.c.b16 %v2589, %v2587
    %v2668 = vpack.c.b16 %v2590, %v2588
    %v2669 = vpack.c.b16 %v2593, %v2591
    %v2670 = vpack.c.b16 %v2594, %v2592
    %v2671 = vpack.c.b16 %v2597, %v2595
    %v2672 = vpack.c.b16 %v2598, %v2596
    %v2673 = vpack.c.b16 %v2601, %v2599
    %v2674 = vpack.c.b16 %v2602, %v2600
    %v2675 = vpack.c.b16 %v2605, %v2603
    %v2676 = vpack.c.b16 %v2606, %v2604
    %v2677 = vpack.c.b16 %v2609, %v2607
    %v2678 = vpack.c.b16 %v2610, %v2608
    %v2679 = vpack.c.b16 %v2613, %v2611
    %v2680 = vpack.c.b16 %v2614, %v2612
    %v2681 = vpack.c.b16 %v2617, %v2615
    %v2682 = vpack.c.b16 %v2618, %v2616
    %2747 = vmatprep.subr.bf16.mxu0 %v2634
    %2748 = vmatpush1.bf16.msra.mxu0 %v2633
    %2749 = vmatprep.subr.bf16.mxu0 %v2632
    %2750 = vmatpush1.bf16.msra.mxu0 %v2631
    %2751 = vmatprep.subr.bf16.mxu0 %v2630
    %2752 = vmatpush1.bf16.msra.mxu0 %v2629
    %2753 = vmatprep.subr.bf16.mxu0 %v2628
    %2754 = vmatpush1.bf16.msra.mxu0 %v2627
    %2755 = vmatprep.subr.bf16.mxu0 %v2626
    %2756 = vmatpush1.bf16.msra.mxu0 %v2625
    %2757 = vmatprep.subr.bf16.mxu0 %v2624
    %2758 = vmatpush1.bf16.msra.mxu0 %v2623
    %2759 = vmatprep.subr.bf16.mxu0 %v2622
    %2760 = vmatpush1.bf16.msra.mxu0 %v2621
    %2761 = vmatprep.subr.bf16.mxu0 %v2620
    %2762 = vmatpush1.bf16.msra.mxu0 %v2619
    %2763 = vmatprep.subr.bf16.mxu0 %v2650
    %2764 = vmatpush2.bf16.msra.mxu0 %v2649
    %2765 = vmatprep.subr.bf16.mxu0 %v2648
    %2766 = vmatpush2.bf16.msra.mxu0 %v2647
    %2767 = vmatprep.subr.bf16.mxu0 %v2646
    %2768 = vmatpush2.bf16.msra.mxu0 %v2645
    %2769 = vmatprep.subr.bf16.mxu0 %v2644
    %2770 = vmatpush2.bf16.msra.mxu0 %v2643
    %2771 = vmatprep.subr.bf16.mxu0 %v2642
    %2772 = vmatpush2.bf16.msra.mxu0 %v2641
    %2773 = vmatprep.subr.bf16.mxu0 %v2640
    %2774 = vmatpush2.bf16.msra.mxu0 %v2639
    %2775 = vmatprep.subr.bf16.mxu0 %v2638
    %2776 = vmatpush2.bf16.msra.mxu0 %v2637
    %2777 = vmatprep.subr.bf16.mxu0 %v2636
    %2778 = vmatpush2.bf16.msra.mxu0 %v2635
    %2779 = vmatprep.mubr.bf16.mxu0 %v2348
    %2780 = vmatmul.mubr.bf16.gmra.mxu0 %v2347
    %v2781 = vpop.f32.mrf.mxu0
    %v2782 = vadd.f32 %v2420, %v2781
    %v2783 = vpop.f32.mrf.mxu0
    %v2784 = vadd.f32 %v2424, %v2783
    %v2785 = vpop.f32.mrf.mxu0
    %v2786 = vadd.f32 %v2420, %v2785
    %v2787 = vpop.f32.mrf.mxu0
    %v2788 = vadd.f32 %v2424, %v2787
    %2789 = vdwg.mxu0
    %2790 = vmatprep.subr.bf16.mxu0 %v2666
    %2791 = vmatpush1.bf16.msra.mxu0 %v2665
    %2792 = vmatprep.subr.bf16.mxu0 %v2664
    %2793 = vmatpush1.bf16.msra.mxu0 %v2663
    %2794 = vmatprep.subr.bf16.mxu0 %v2662
    %2795 = vmatpush1.bf16.msra.mxu0 %v2661
    %2796 = vmatprep.subr.bf16.mxu0 %v2660
    %2797 = vmatpush1.bf16.msra.mxu0 %v2659
    %2798 = vmatprep.subr.bf16.mxu0 %v2658
    %2799 = vmatpush1.bf16.msra.mxu0 %v2657
    %2800 = vmatprep.subr.bf16.mxu0 %v2656
    %2801 = vmatpush1.bf16.msra.mxu0 %v2655
    %2802 = vmatprep.subr.bf16.mxu0 %v2654
    %2803 = vmatpush1.bf16.msra.mxu0 %v2653
    %2804 = vmatprep.subr.bf16.mxu0 %v2652
    %2805 = vmatpush1.bf16.msra.mxu0 %v2651
    %2806 = vmatprep.subr.bf16.mxu0 %v2682
    %2807 = vmatpush2.bf16.msra.mxu0 %v2681
    %2808 = vmatprep.subr.bf16.mxu0 %v2680
    %2809 = vmatpush2.bf16.msra.mxu0 %v2679
    %2810 = vmatprep.subr.bf16.mxu0 %v2678
    %2811 = vmatpush2.bf16.msra.mxu0 %v2677
    %2812 = vmatprep.subr.bf16.mxu0 %v2676
    %2813 = vmatpush2.bf16.msra.mxu0 %v2675
    %2814 = vmatprep.subr.bf16.mxu0 %v2674
    %2815 = vmatpush2.bf16.msra.mxu0 %v2673
    %2816 = vmatprep.subr.bf16.mxu0 %v2672
    %2817 = vmatpush2.bf16.msra.mxu0 %v2671
    %2818 = vmatprep.subr.bf16.mxu0 %v2670
    %2819 = vmatpush2.bf16.msra.mxu0 %v2669
    %2820 = vmatprep.subr.bf16.mxu0 %v2668
    %2821 = vmatpush2.bf16.msra.mxu0 %v2667
    %2822 = vmatprep.mubr.bf16.mxu0 %v2350
    %2823 = vmatmul.mubr.bf16.gmra.mxu0 %v2349
    %v2824 = vpop.f32.mrf.mxu0
    %v2825 = vadd.f32 %v2782, %v2824
    %v2826 = vpop.f32.mrf.mxu0
    %v2827 = vadd.f32 %v2784, %v2826
    %v2828 = vpop.f32.mrf.mxu0
    %v2829 = vadd.f32 %v2786, %v2828
    %v2830 = vpop.f32.mrf.mxu0
    %v2831 = vadd.f32 %v2788, %v2830
    %2832 = vdwg.mxu0
    %v2833 = vmax.f32 %v2825, 0.0
    %v2834 = vmax.f32 %v2827, 0.0
    %v2835 = vmax.f32 %v2829, 0.0
    %v2836 = vmax.f32 %v2831, 0.0
    %v2837 = vpack.c.bf16 %v2835, %v2833
    %v2838 = vpack.c.bf16 %v2836, %v2834
    %v2839 = vld [vmem:[#allocation9] sm:$0xff]
    %v2840 = vld [vmem:[#allocation9 + $0x8] sm:$0xf]
    %v2841 = vld [vmem:[#allocation9 + $0xc] sm:$0xff]
    %v2842 = vld [vmem:[#allocation9 + $0x14] sm:$0xf]
    %v2843 = vld [vmem:[#allocation9 + $0x18] sm:$0xff]
    %v2844 = vld [vmem:[#allocation9 + $0x20] sm:$0xf]
    %v2845 = vld [vmem:[#allocation9 + $0x24] sm:$0xff]
    %v2846 = vld [vmem:[#allocation9 + $0x2c] sm:$0xf]
    %v2847 = vld [vmem:[#allocation9 + $0x30] sm:$0xff]
    %v2848 = vld [vmem:[#allocation9 + $0x38] sm:$0xf]
    %v2849 = vld [vmem:[#allocation9 + $0x3c] sm:$0xff]
    %v2850 = vld [vmem:[#allocation9 + $0x44] sm:$0xf]
    %v2851 = vld [vmem:[#allocation9 + $0x48] sm:$0xff]
    %v2852 = vld [vmem:[#allocation9 + $0x50] sm:$0xf]
    %v2853 = vld [vmem:[#allocation9 + $0x54] sm:$0xff]
    %v2854 = vld [vmem:[#allocation9 + $0x5c] sm:$0xf]
    %v2855 = vld [vmem:[#allocation9 + $0x60] sm:$0xff]
    %v2856 = vld [vmem:[#allocation9 + $0x68] sm:$0xf]
    %v2857 = vld [vmem:[#allocation9 + $0x6c] sm:$0xff]
    %v2858 = vld [vmem:[#allocation9 + $0x74] sm:$0xf]
    %v2859 = vld [vmem:[#allocation9 + $0x78] sm:$0xff]
    %v2860 = vld [vmem:[#allocation9 + $0x80] sm:$0xf]
    %v2861 = vld [vmem:[#allocation9 + $0x84] sm:$0xff]
    %v2862 = vld [vmem:[#allocation9 + $0x8c] sm:$0xf]
    %v2863 = vld [vmem:[#allocation9 + $0x90] sm:$0xff]
    %v2864 = vld [vmem:[#allocation9 + $0x98] sm:$0xf]
    %v2865 = vld [vmem:[#allocation9 + $0x9c] sm:$0xff]
    %v2866 = vld [vmem:[#allocation9 + $0xa4] sm:$0xf]
    %v2867 = vld [vmem:[#allocation9 + $0xa8] sm:$0xff]
    %v2868 = vld [vmem:[#allocation9 + $0xb0] sm:$0xf]
    %v2869 = vld [vmem:[#allocation9 + $0xb4] sm:$0xff]
    %v2870 = vld [vmem:[#allocation9 + $0xbc] sm:$0xf]
    %v2871 = vld [vmem:[#allocation9 + $0xc0] sm:$0xff]
    %v2872 = vld [vmem:[#allocation9 + $0xc8] sm:$0xf]
    %v2873 = vld [vmem:[#allocation9 + $0xcc] sm:$0xff]
    %v2874 = vld [vmem:[#allocation9 + $0xd4] sm:$0xf]
    %v2875 = vld [vmem:[#allocation9 + $0xd8] sm:$0xff]
    %v2876 = vld [vmem:[#allocation9 + $0xe0] sm:$0xf]
    %v2877 = vld [vmem:[#allocation9 + $0xe4] sm:$0xff]
    %v2878 = vld [vmem:[#allocation9 + $0xec] sm:$0xf]
    %v2879 = vld [vmem:[#allocation9 + $0xf0] sm:$0xff]
    %v2880 = vld [vmem:[#allocation9 + $0xf8] sm:$0xf]
    %v2881 = vld [vmem:[#allocation9 + $0xfc] sm:$0xff]
    %v2882 = vld [vmem:[#allocation9 + $0x104] sm:$0xf]
    %v2883 = vld [vmem:[#allocation9 + $0x108] sm:$0xff]
    %v2884 = vld [vmem:[#allocation9 + $0x110] sm:$0xf]
    %v2885 = vld [vmem:[#allocation9 + $0x114] sm:$0xff]
    %v2886 = vld [vmem:[#allocation9 + $0x11c] sm:$0xf]
    %v2887 = vld [vmem:[#allocation9 + $0x120] sm:$0xff]
    %v2888 = vld [vmem:[#allocation9 + $0x128] sm:$0xf]
    %v2889 = vld [vmem:[#allocation9 + $0x12c] sm:$0xff]
    %v2890 = vld [vmem:[#allocation9 + $0x134] sm:$0xf]
    %v2891 = vld [vmem:[#allocation9 + $0x138] sm:$0xff]
    %v2892 = vld [vmem:[#allocation9 + $0x140] sm:$0xf]
    %v2893 = vld [vmem:[#allocation9 + $0x144] sm:$0xff]
    %v2894 = vld [vmem:[#allocation9 + $0x14c] sm:$0xf]
    %v2895 = vld [vmem:[#allocation9 + $0x150] sm:$0xff]
    %v2896 = vld [vmem:[#allocation9 + $0x158] sm:$0xf]
    %v2897 = vld [vmem:[#allocation9 + $0x15c] sm:$0xff]
    %v2898 = vld [vmem:[#allocation9 + $0x164] sm:$0xf]
    %v2899 = vld [vmem:[#allocation9 + $0x168] sm:$0xff]
    %v2900 = vld [vmem:[#allocation9 + $0x170] sm:$0xf]
    %v2901 = vld [vmem:[#allocation9 + $0x174] sm:$0xff]
    %v2902 = vld [vmem:[#allocation9 + $0x17c] sm:$0xf]
    %v2903 = vld [vmem:[#allocation10] sm:$0x7]
    %v2905 = vlaneseq
    %v2906 = vshrl.u32 %v2905, 7
    %v2907 = vsub.s32 0, %v2906
    %v2908 = vrot.slane %v2903, %v2907
    %v2909 = vlaneseq
    %v2910 = vshrl.u32 %v2909, 7
    %v2911 = vsub.s32 1, %v2910
    %v2912 = vrot.slane %v2903, %v2911
    %v2913 = vlaneseq
    %v2914 = vshrl.u32 %v2913, 7
    %v2915 = vsub.s32 2, %v2914
    %v2916 = vrot.slane %v2903, %v2915
    %v2984 = vunpack.c.l.b16 %v2839
    %v2985 = vunpack.c.h.b16 %v2839
    %v2986 = vunpack.c.l.b16 %v2840
    %v2987 = vunpack.c.l.b16 %v2841
    %v2988 = vunpack.c.h.b16 %v2841
    %v2989 = vunpack.c.l.b16 %v2842
    %v2990 = vunpack.c.l.b16 %v2843
    %v2991 = vunpack.c.h.b16 %v2843
    %v2992 = vunpack.c.l.b16 %v2844
    %v2993 = vunpack.c.l.b16 %v2845
    %v2994 = vunpack.c.h.b16 %v2845
    %v2995 = vunpack.c.l.b16 %v2846
    %v2996 = vunpack.c.l.b16 %v2847
    %v2997 = vunpack.c.h.b16 %v2847
    %v2998 = vunpack.c.l.b16 %v2848
    %v2999 = vunpack.c.l.b16 %v2849
    %v3000 = vunpack.c.h.b16 %v2849
    %v3001 = vunpack.c.l.b16 %v2850
    %v3002 = vunpack.c.l.b16 %v2851
    %v3003 = vunpack.c.h.b16 %v2851
    %v3004 = vunpack.c.l.b16 %v2852
    %v3005 = vunpack.c.l.b16 %v2853
    %v3006 = vunpack.c.h.b16 %v2853
    %v3007 = vunpack.c.l.b16 %v2854
    %v3008 = vunpack.c.l.b16 %v2855
    %v3009 = vunpack.c.h.b16 %v2855
    %v3010 = vunpack.c.l.b16 %v2856
    %v3011 = vunpack.c.l.b16 %v2857
    %v3012 = vunpack.c.h.b16 %v2857
    %v3013 = vunpack.c.l.b16 %v2858
    %v3014 = vunpack.c.l.b16 %v2859
    %v3015 = vunpack.c.h.b16 %v2859
    %v3016 = vunpack.c.l.b16 %v2860
    %v3017 = vunpack.c.l.b16 %v2861
    %v3018 = vunpack.c.h.b16 %v2861
    %v3019 = vunpack.c.l.b16 %v2862
    %v3020 = vunpack.c.l.b16 %v2863
    %v3021 = vunpack.c.h.b16 %v2863
    %v3022 = vunpack.c.l.b16 %v2864
    %v3023 = vunpack.c.l.b16 %v2865
    %v3024 = vunpack.c.h.b16 %v2865
    %v3025 = vunpack.c.l.b16 %v2866
    %v3026 = vunpack.c.l.b16 %v2867
    %v3027 = vunpack.c.h.b16 %v2867
    %v3028 = vunpack.c.l.b16 %v2868
    %v3029 = vunpack.c.l.b16 %v2869
    %v3030 = vunpack.c.h.b16 %v2869
    %v3031 = vunpack.c.l.b16 %v2870
    %v3032 = vunpack.c.l.b16 %v2871
    %v3033 = vunpack.c.h.b16 %v2871
    %v3034 = vunpack.c.l.b16 %v2872
    %v3035 = vunpack.c.l.b16 %v2873
    %v3036 = vunpack.c.h.b16 %v2873
    %v3037 = vunpack.c.l.b16 %v2874
    %v3038 = vunpack.c.l.b16 %v2875
    %v3039 = vunpack.c.h.b16 %v2875
    %v3040 = vunpack.c.l.b16 %v2876
    %v3041 = vunpack.c.l.b16 %v2877
    %v3042 = vunpack.c.h.b16 %v2877
    %v3043 = vunpack.c.l.b16 %v2878
    %v3044 = vunpack.c.l.b16 %v2879
    %v3045 = vunpack.c.h.b16 %v2879
    %v3046 = vunpack.c.l.b16 %v2880
    %v3047 = vunpack.c.l.b16 %v2881
    %v3048 = vunpack.c.h.b16 %v2881
    %v3049 = vunpack.c.l.b16 %v2882
    %v3050 = vunpack.c.l.b16 %v2883
    %v3051 = vunpack.c.h.b16 %v2883
    %v3052 = vunpack.c.l.b16 %v2884
    %v3053 = vunpack.c.l.b16 %v2885
    %v3054 = vunpack.c.h.b16 %v2885
    %v3055 = vunpack.c.l.b16 %v2886
    %v3056 = vunpack.c.l.b16 %v2887
    %v3057 = vunpack.c.h.b16 %v2887
    %v3058 = vunpack.c.l.b16 %v2888
    %v3059 = vunpack.c.l.b16 %v2889
    %v3060 = vunpack.c.h.b16 %v2889
    %v3061 = vunpack.c.l.b16 %v2890
    %v3062 = vunpack.c.l.b16 %v2891
    %v3063 = vunpack.c.h.b16 %v2891
    %v3064 = vunpack.c.l.b16 %v2892
    %v3065 = vunpack.c.l.b16 %v2893
    %v3066 = vunpack.c.h.b16 %v2893
    %v3067 = vunpack.c.l.b16 %v2894
    %v3068 = vunpack.c.l.b16 %v2895
    %v3069 = vunpack.c.h.b16 %v2895
    %v3070 = vunpack.c.l.b16 %v2896
    %v3071 = vunpack.c.l.b16 %v2897
    %v3072 = vunpack.c.h.b16 %v2897
    %v3073 = vunpack.c.l.b16 %v2898
    %v3074 = vunpack.c.l.b16 %v2899
    %v3075 = vunpack.c.h.b16 %v2899
    %v3076 = vunpack.c.l.b16 %v2900
    %v3077 = vunpack.c.l.b16 %v2901
    %v3078 = vunpack.c.h.b16 %v2901
    %v3079 = vunpack.c.l.b16 %v2902
    %v3080 = vpack.c.b16 %v2987, %v2984
    %v3081 = vpack.c.b16 %v2988, %v2985
    %v3082 = vpack.c.b16 %v2989, %v2986
    %v3083 = vpack.c.b16 %v2993, %v2990
    %v3084 = vpack.c.b16 %v2994, %v2991
    %v3085 = vpack.c.b16 %v2995, %v2992
    %v3086 = vpack.c.b16 %v2999, %v2996
    %v3087 = vpack.c.b16 %v3000, %v2997
    %v3088 = vpack.c.b16 %v3001, %v2998
    %v3089 = vpack.c.b16 %v3005, %v3002
    %v3090 = vpack.c.b16 %v3006, %v3003
    %v3091 = vpack.c.b16 %v3007, %v3004
    %v3092 = vpack.c.b16 %v3011, %v3008
    %v3093 = vpack.c.b16 %v3012, %v3009
    %v3094 = vpack.c.b16 %v3013, %v3010
    %v3095 = vpack.c.b16 %v3017, %v3014
    %v3096 = vpack.c.b16 %v3018, %v3015
    %v3097 = vpack.c.b16 %v3019, %v3016
    %v3098 = vpack.c.b16 %v3023, %v3020
    %v3099 = vpack.c.b16 %v3024, %v3021
    %v3100 = vpack.c.b16 %v3025, %v3022
    %v3101 = vpack.c.b16 %v3029, %v3026
    %v3102 = vpack.c.b16 %v3030, %v3027
    %v3103 = vpack.c.b16 %v3031, %v3028
    %v3104 = vpack.c.b16 %v3035, %v3032
    %v3105 = vpack.c.b16 %v3036, %v3033
    %v3106 = vpack.c.b16 %v3037, %v3034
    %v3107 = vpack.c.b16 %v3041, %v3038
    %v3108 = vpack.c.b16 %v3042, %v3039
    %v3109 = vpack.c.b16 %v3043, %v3040
    %v3110 = vpack.c.b16 %v3047, %v3044
    %v3111 = vpack.c.b16 %v3048, %v3045
    %v3112 = vpack.c.b16 %v3049, %v3046
    %v3113 = vpack.c.b16 %v3053, %v3050
    %v3114 = vpack.c.b16 %v3054, %v3051
    %v3115 = vpack.c.b16 %v3055, %v3052
    %v3116 = vpack.c.b16 %v3059, %v3056
    %v3117 = vpack.c.b16 %v3060, %v3057
    %v3118 = vpack.c.b16 %v3061, %v3058
    %v3119 = vpack.c.b16 %v3065, %v3062
    %v3120 = vpack.c.b16 %v3066, %v3063
    %v3121 = vpack.c.b16 %v3067, %v3064
    %v3122 = vpack.c.b16 %v3071, %v3068
    %v3123 = vpack.c.b16 %v3072, %v3069
    %v3124 = vpack.c.b16 %v3073, %v3070
    %v3125 = vpack.c.b16 %v3077, %v3074
    %v3126 = vpack.c.b16 %v3078, %v3075
    %v3127 = vpack.c.b16 %v3079, %v3076
    %3176 = vmatprep.subr.bf16.mxu0 %v3102
    %3177 = vmatpush1.bf16.msra.mxu0 %v3101
    %3178 = vmatprep.subr.bf16.mxu0 %v3099
    %3179 = vmatpush1.bf16.msra.mxu0 %v3098
    %3180 = vmatprep.subr.bf16.mxu0 %v3096
    %3181 = vmatpush1.bf16.msra.mxu0 %v3095
    %3182 = vmatprep.subr.bf16.mxu0 %v3093
    %3183 = vmatpush1.bf16.msra.mxu0 %v3092
    %3184 = vmatprep.subr.bf16.mxu0 %v3090
    %3185 = vmatpush1.bf16.msra.mxu0 %v3089
    %3186 = vmatprep.subr.bf16.mxu0 %v3087
    %3187 = vmatpush1.bf16.msra.mxu0 %v3086
    %3188 = vmatprep.subr.bf16.mxu0 %v3084
    %3189 = vmatpush1.bf16.msra.mxu0 %v3083
    %3190 = vmatprep.subr.bf16.mxu0 %v3081
    %3191 = vmatpush1.bf16.msra.mxu0 %v3080
    %3192 = vmatprep.subr.bf16.mxu0 %v3126
    %3193 = vmatpush2.bf16.msra.mxu0 %v3125
    %3194 = vmatprep.subr.bf16.mxu0 %v3123
    %3195 = vmatpush2.bf16.msra.mxu0 %v3122
    %3196 = vmatprep.subr.bf16.mxu0 %v3120
    %3197 = vmatpush2.bf16.msra.mxu0 %v3119
    %3198 = vmatprep.subr.bf16.mxu0 %v3117
    %3199 = vmatpush2.bf16.msra.mxu0 %v3116
    %3200 = vmatprep.subr.bf16.mxu0 %v3114
    %3201 = vmatpush2.bf16.msra.mxu0 %v3113
    %3202 = vmatprep.subr.bf16.mxu0 %v3111
    %3203 = vmatpush2.bf16.msra.mxu0 %v3110
    %3204 = vmatprep.subr.bf16.mxu0 %v3108
    %3205 = vmatpush2.bf16.msra.mxu0 %v3107
    %3206 = vmatprep.subr.bf16.mxu0 %v3105
    %3207 = vmatpush2.bf16.msra.mxu0 %v3104
    %3208 = vmatprep.mubr.bf16.mxu0 %v2838
    %3209 = vmatmul.mubr.bf16.gmra.mxu0 %v2837
    %v3210 = vpop.f32.mrf.mxu0
    %v3211 = vadd.f32 %v2908, %v3210
    %v3212 = vpop.f32.mrf.mxu0
    %v3213 = vadd.f32 %v2912, %v3212
    %v3214 = vpop.f32.mrf.mxu0
    %v3215 = vadd.f32 %v2908, %v3214
    %v3216 = vpop.f32.mrf.mxu0
    %v3217 = vadd.f32 %v2912, %v3216
    %3218 = vdwg.mxu0
    %3219 = vmatprep.subr.bf16.mxu0 0
    %3220 = vmatpush1.bf16.msra.mxu0 %v3103
    %3221 = vmatprep.subr.bf16.mxu0 0
    %3222 = vmatpush1.bf16.msra.mxu0 %v3100
    %3223 = vmatprep.subr.bf16.mxu0 0
    %3224 = vmatpush1.bf16.msra.mxu0 %v3097
    %3225 = vmatprep.subr.bf16.mxu0 0
    %3226 = vmatpush1.bf16.msra.mxu0 %v3094
    %3227 = vmatprep.subr.bf16.mxu0 0
    %3228 = vmatpush1.bf16.msra.mxu0 %v3091
    %3229 = vmatprep.subr.bf16.mxu0 0
    %3230 = vmatpush1.bf16.msra.mxu0 %v3088
    %3231 = vmatprep.subr.bf16.mxu0 0
    %3232 = vmatpush1.bf16.msra.mxu0 %v3085
    %3233 = vmatprep.subr.bf16.mxu0 0
    %3234 = vmatpush1.bf16.msra.mxu0 %v3082
    %3235 = vmatprep.subr.bf16.mxu0 0
    %3236 = vmatpush2.bf16.msra.mxu0 %v3127
    %3237 = vmatprep.subr.bf16.mxu0 0
    %3238 = vmatpush2.bf16.msra.mxu0 %v3124
    %3239 = vmatprep.subr.bf16.mxu0 0
    %3240 = vmatpush2.bf16.msra.mxu0 %v3121
    %3241 = vmatprep.subr.bf16.mxu0 0
    %3242 = vmatpush2.bf16.msra.mxu0 %v3118
    %3243 = vmatprep.subr.bf16.mxu0 0
    %3244 = vmatpush2.bf16.msra.mxu0 %v3115
    %3245 = vmatprep.subr.bf16.mxu0 0
    %3246 = vmatpush2.bf16.msra.mxu0 %v3112
    %3247 = vmatprep.subr.bf16.mxu0 0
    %3248 = vmatpush2.bf16.msra.mxu0 %v3109
    %3249 = vmatprep.subr.bf16.mxu0 0
    %3250 = vmatpush2.bf16.msra.mxu0 %v3106
    %3251 = vmatprep.mubr.bf16.mxu0 %v2838
    %3252 = vmatmul.mubr.bf16.gmra.mxu0 %v2837
    %v3253 = vpop.f32.mrf.mxu0
    %v3254 = vadd.f32 %v2916, %v3253
    %v3255 = vpop.f32.mrf.mxu0
    %v3256 = vpop.f32.mrf.mxu0
    %v3257 = vadd.f32 %v2916, %v3256
    %v3258 = vpop.f32.mrf.mxu0
    %3259 = vdwg.mxu0
    %v3260 = vpack.c.bf16 %v3215, %v3211
    %v3261 = vpack.c.bf16 %v3217, %v3213
    %v3262 = vpack.c.bf16 %v3257, %v3254
    %v3266 = vunpack.c.l.b16 %v3260
    %v3267 = vunpack.c.l.b16 %v3261
    %v3268 = vunpack.c.l.b16 %v3262
    %v3269 = vunpack.c.h.b16 %v3260
    %v3270 = vunpack.c.h.b16 %v3261
    %v3271 = vunpack.c.h.b16 %v3262
    %v3272 = vpack.c.b16 %v3267, %v3266
    %v3273 = vpack.c.b16 %v3268, %v3268
    %v3274 = vpack.c.b16 %v3270, %v3269
    %v3275 = vpack.c.b16 %v3271, %v3271
    %3280 = vst [vmem:[%s7] sm:$0xff] %v3272
    %3281 = vst [vmem:[%s7 + $0x8] sm:$0xf] %v3273
    %3282 = vst [vmem:[%s7 + $0xc] sm:$0xff] %v3274
    %3283 = vst [vmem:[%s7 + $0x14] sm:$0xf] %v3275
    // Predicated region
    $region54: #{model_forward.1} parent=1 // pred_check
      _
    $region55: #{model_forward.1} parent=1 // pred_check_branch
      %3285 = sbr.rel (0) target = $region57
    $region56: #{model_forward.1} parent=1 // pred_region
      _
    $region57: #{model_forward.1} parent=1 // pred_fallthru
      _
    // Predicated region
    $region58: #{model_forward.1} parent=1 // pred_check
      _
    $region59: #{model_forward.1} parent=1 // pred_check_branch
      %3287 = sbr.rel (0) target = $region61
    $region60: #{model_forward.1} parent=1 // pred_region
      _
    $region61: #{model_forward.1} parent=1 // pred_fallthru
      _
    %3288 = vsyncpa [#allocation3], 1
    %3289 = vsyncpa [#allocation5], 1
    %3290 = vsyncpa [#allocation8], 1
    %3291 = vsyncpa [#allocation11], 1

</llo_original>
